<compile_context>
chip_gen: v6e
topology: v6e:2x2x1
jax: 0.10.0
libtpu: 0.0.40
codegen_flags: <defaults>
</compile_context>

<pallas_src>
import jax
import jax.numpy as jnp
from jax.experimental import pallas as pl
from jax.experimental.pallas import tpu as pltpu


# ----------------------------------------------------------------------------
# Kernels
# ----------------------------------------------------------------------------
def _conv3x3_s2_kernel(x_ref, s_ref, l_ref, b_ref, o_ref):
    """Strided 3x3 conv on a block of `nb` images; NCHW layout end to end.

    x_ref: (nb, C*H, W)       input rows (channel-major, row-major), unpadded
    s_ref: (3, W, Wo)         per-kw horizontal gather: col wo picks input col
                              2*wo + kw (missing match == right zero-pad)
    l_ref: (3, Cout*Ho, C*H)  per-kw vertical gather + channel mix (entries
                              where 2*ho+kh would hit the bottom pad are 0)
    b_ref: (Cout*Ho, 1)       bias replicated over ho
    o_ref: (nb, Cout*Ho, Wo)
    """
    nb = x_ref.shape[0]

    # Hoist the (tiny) constant operands out of the image loop.
    sk = [s_ref[k] for k in range(3)]          # each (W, Wo), f32
    lk = [l_ref[k] for k in range(3)]          # each (Cout*Ho, C*H), f32
    b = b_ref[...]                             # (Cout*Ho, 1), f32

    for i in range(nb):                        # nb is small and static
        x_i = x_ref[i].astype(jnp.float32)     # (C*H, W)
        acc = b                                # broadcasts over Wo below
        for kw in range(3):
            # Horizontal stride-2 gather (+ right pad) as one MXU matmul.
            y = jnp.dot(x_i, sk[kw], preferred_element_type=jnp.float32)      # (C*H, Wo)
            # Vertical gather (+ bottom pad) fused with the channel mixing.
            acc = acc + jnp.dot(lk[kw], y, preferred_element_type=jnp.float32)  # (Cout*Ho, Wo)
        # NOTE: for large channel counts, cast x / the mixing matrices to
        # bf16 here (keeping f32 accumulation) for full MXU rate.
        o_ref[i] = acc.astype(o_ref.dtype)


def _avgpool2x2_kernel(x_ref, m_ref, o_ref):
    """avg_pool2d(2, 2) as a single matmul per block of row pairs.

    x_ref: (rb, 2*W)   each row = the two input image rows of one output row
    m_ref: (2*W, Wo)   pooling matrix (0.25 at the four window positions)
    o_ref: (rb, Wo)
    """
    o_ref[...] = jnp.dot(
        x_ref[...].astype(jnp.float32), m_ref[...],
        preferred_element_type=jnp.float32,
    ).astype(o_ref.dtype)


# ----------------------------------------------------------------------------
# Constant gather / mixing matrices (host/XLA side, tiny)
# ----------------------------------------------------------------------------
def _conv_gather_matrices(weight, H, W):
    Cout, Cin = weight.shape[0], weight.shape[1]
    Ho, Wo = H // 2, W // 2

    # s_mat[kw, w, wo] = 1 iff w == 2*wo + kw  (kw==2, wo==Wo-1 -> no match: right pad)
    kw_i = jnp.arange(3, dtype=jnp.int32)[:, None, None]
    w_i = jnp.arange(W, dtype=jnp.int32)[None, :, None]
    wo_i = jnp.arange(Wo, dtype=jnp.int32)[None, None, :]
    s_mat = (w_i == 2 * wo_i + kw_i).astype(jnp.float32)          # (3, W, Wo)

    # l_mat[kw, co*Ho + ho, ci*H + h] = weight[co, ci, h - 2*ho, kw] if 0 <= h-2*ho <= 2
    row = jnp.arange(Cout * Ho, dtype=jnp.int32)[:, None]
    co, ho = row // Ho, row % Ho
    col = jnp.arange(Cin * H, dtype=jnp.int32)[None, :]
    ci, h = col // H, col % H
    kh = h - 2 * ho
    valid = (kh >= 0) & (kh <= 2)
    kh_c = jnp.clip(kh, 0, 2)
    wf = weight.astype(jnp.float32)
    l_mat = jnp.stack(
        [jnp.where(valid, wf[co, ci, kh_c, kw], 0.0) for kw in range(3)], axis=0
    )                                                             # (3, Cout*Ho, Cin*H)
    return s_mat, l_mat


# ----------------------------------------------------------------------------
# Block-size selection
# ----------------------------------------------------------------------------
_TARGET_BLOCK_BYTES = 1 << 20  # ~1 MiB input block per grid step


def _pick_image_block(n_images, image_bytes, max_images=8):
    nb = max(1, min(n_images, max_images,
                    _TARGET_BLOCK_BYTES // max(image_bytes, 1)))
    if n_images >= 2:
        # keep >= 2 grid steps so both TensorCores (v7x megacore) get work
        nb = max(1, min(nb, n_images // 2))
    while n_images % nb:
        nb -= 1
    return nb


def _pick_row_block(n_rows, row_bytes):
    cap = max(1, min(n_rows, _TARGET_BLOCK_BYTES // max(row_bytes, 1)))
    for rb in range(cap, 0, -1):
        # sublane-dim block sizes must be a multiple of 8 unless full extent
        if n_rows % rb == 0 and rb % 8 == 0 and n_rows // rb >= 2:
            return rb
    return n_rows


# ----------------------------------------------------------------------------
# Wrapper
# ----------------------------------------------------------------------------
def downsample_forward(x, weight=None, bias=None, with_conv=True):
    """x: (B, D, C, H, W). weight: (Cout, Cin, 3, 3), bias: (Cout,)."""
    B, D, C, H, W = x.shape
    # PyTorch's trailing .view(B, D, -1, H//2, W//2) only matches the conv /
    # pool output sizes when H and W are even.
    assert H % 2 == 0 and W % 2 == 0, "Downsample expects even H and W"
    N = B * D
    Ho, Wo = H // 2, W // 2
    itemsize = x.dtype.itemsize
    cparams = pltpu.CompilerParams(
        dimension_semantics=("parallel",),
        vmem_limit_bytes=32 * 1024 * 1024,
    )

    if with_conv:
        assert weight is not None and bias is not None
        Cout = weight.shape[0]
        s_mat, l_mat = _conv_gather_matrices(weight, H, W)
        b_vec = jnp.repeat(bias.astype(jnp.float32), Ho).reshape(Cout * Ho, 1)

        x3 = x.reshape(N, C * H, W)           # free contiguous view, no HBM pass
        nb = _pick_image_block(N, C * H * W * itemsize)

        out = pl.pallas_call(
            _conv3x3_s2_kernel,
            out_shape=jax.ShapeDtypeStruct((N, Cout * Ho, Wo), x.dtype),
            grid=(N // nb,),
            in_specs=[
                pl.BlockSpec((nb, C * H, W), lambda g: (g, 0, 0)),
                pl.BlockSpec((3, W, Wo), lambda g: (0, 0, 0)),
                pl.BlockSpec((3, Cout * Ho, C * H), lambda g: (0, 0, 0)),
                pl.BlockSpec((Cout * Ho, 1), lambda g: (0, 0)),
            ],
            out_specs=pl.BlockSpec((nb, Cout * Ho, Wo), lambda g: (g, 0, 0)),
            compiler_params=cparams,
        )(x3, s_mat, l_mat, b_vec)
        return out.reshape(B, D, Cout, Ho, Wo)  # free contiguous view

    # avg_pool2d(2, 2): view each output row's two input rows as one row of
    # length 2*W; a single matmul pools both the row pair and column pairs.
    n_rows = N * C * Ho
    x2 = x.reshape(n_rows, 2 * W)               # free contiguous view
    col = jnp.arange(2 * W, dtype=jnp.int32) % W
    pool_mat = ((col[:, None] // 2) ==
                jnp.arange(Wo, dtype=jnp.int32)[None, :]).astype(jnp.float32) * 0.25

    rb = _pick_row_block(n_rows, 2 * W * itemsize)
    out = pl.pallas_call(
        _avgpool2x2_kernel,
        out_shape=jax.ShapeDtypeStruct((n_rows, Wo), x.dtype),
        grid=(n_rows // rb,),
        in_specs=[
            pl.BlockSpec((rb, 2 * W), lambda g: (g, 0)),
            pl.BlockSpec((2 * W, Wo), lambda g: (0, 0)),
        ],
        out_specs=pl.BlockSpec((rb, Wo), lambda g: (g, 0)),
        compiler_params=cparams,
    )(x2, pool_mat)
    return out.reshape(B, D, C, Ho, Wo)         # free contiguous view


# ----------------------------------------------------------------------------
# Pure-JAX reference for verification
# ----------------------------------------------------------------------------
def _reference(x, weight, bias, with_conv):
    B, D, C, H, W = x.shape
    xf = x.reshape(B * D, C, H, W)
    if with_conv:
        xf = jnp.pad(xf, ((0, 0), (0, 0), (0, 1), (0, 1)))
        out = jax.lax.conv_general_dilated(
            xf, weight, window_strides=(2, 2), padding="VALID",
            dimension_numbers=("NCHW", "OIHW", "NCHW"),
            precision=jax.lax.Precision.HIGHEST,
        ) + bias.reshape(1, -1, 1, 1)
    else:
        out = jax.lax.reduce_window(
            xf, 0.0, jax.lax.add,
            window_dimensions=(1, 1, 2, 2), window_strides=(1, 1, 2, 2),
            padding="VALID",
        ) * 0.25
    return out.reshape(B, D, -1, H // 2, W // 2)


if __name__ == "__main__":
    key = jax.random.PRNGKey(0)
    B, D, C, H, W = 2, 2, 4, 16, 16

    kx, kw_, kb = jax.random.split(key, 3)
    x = jax.random.normal(kx, (B, D, C, H, W), dtype=jnp.float32)
    # Conv2d(C, C, kernel_size=3): weight (C, C, 3, 3), bias (C,)
    weight = jax.random.normal(kw_, (C, C, 3, 3), dtype=jnp.float32) * 0.1
    bias = jax.random.normal(kb, (C,), dtype=jnp.float32) * 0.1

    # with_conv = True path
    out_conv = jax.block_until_ready(downsample_forward(x, weight, bias, with_conv=True))
    ref_conv = _reference(x, weight, bias, True)
    assert out_conv.shape == (B, D, C, H // 2, W // 2)
    assert jnp.allclose(out_conv, ref_conv, atol=1e-4, rtol=1e-4)

    # with_conv = False path (avg pool)
    out_pool = jax.block_until_ready(downsample_forward(x, with_conv=False))
    ref_pool = _reference(x, weight, bias, False)
    assert out_pool.shape == (B, D, C, H // 2, W // 2)
    assert jnp.allclose(out_pool, ref_pool, atol=1e-5, rtol=1e-5)

    print("KERNEL_OK")
</pallas_src>

<mosaic_0001>
module attributes {stable_mosaic.version = 11 : i64} {
  func.func @_conv3x3_s2_kernel(%arg0: i32, %arg1: memref<2x64x16xf32, #tpu.memory_space<vmem>>, %arg2: memref<3x16x8xf32, #tpu.memory_space<vmem>>, %arg3: memref<3x32x64xf32, #tpu.memory_space<vmem>>, %arg4: memref<32x1xf32, #tpu.memory_space<vmem>>, %arg5: memref<2x32x8xf32, #tpu.memory_space<vmem>>) attributes {dimension_semantics = [#tpu.dimension_semantics<parallel>], iteration_bounds = array<i64: 2>, scalar_prefetch = 0 : i64, scratch_operands = 0 : i64, tpu.core_type = #tpu.core_type<tc>, window_params = [{transform_indices = @transform_0, window_bounds = array<i64: 2, 64, 16>}, {pipeline_mode = #tpu.pipeline_mode<synchronous>, transform_indices = @transform_1, window_bounds = array<i64: 3, 16, 8>}, {pipeline_mode = #tpu.pipeline_mode<synchronous>, transform_indices = @transform_2, window_bounds = array<i64: 3, 32, 64>}, {pipeline_mode = #tpu.pipeline_mode<synchronous>, transform_indices = @transform_3, window_bounds = array<i64: 32, 1>}, {transform_indices = @transform_4, window_bounds = array<i64: 2, 32, 8>}]} {
    %c0 = arith.constant 0 : index
    %c0_0 = arith.constant 0 : index
    %c0_1 = arith.constant 0 : index
    %0 = vector.load %arg2[%c0, %c0_0, %c0_1] : memref<3x16x8xf32, #tpu.memory_space<vmem>>, vector<1x16x8xf32>
    %1 = vector.shape_cast %0 : vector<1x16x8xf32> to vector<16x8xf32>
    %c1 = arith.constant 1 : index
    %c0_2 = arith.constant 0 : index
    %c0_3 = arith.constant 0 : index
    %2 = vector.load %arg2[%c1, %c0_2, %c0_3] : memref<3x16x8xf32, #tpu.memory_space<vmem>>, vector<1x16x8xf32>
    %3 = vector.shape_cast %2 : vector<1x16x8xf32> to vector<16x8xf32>
    %c2 = arith.constant 2 : index
    %c0_4 = arith.constant 0 : index
    %c0_5 = arith.constant 0 : index
    %4 = vector.load %arg2[%c2, %c0_4, %c0_5] : memref<3x16x8xf32, #tpu.memory_space<vmem>>, vector<1x16x8xf32>
    %5 = vector.shape_cast %4 : vector<1x16x8xf32> to vector<16x8xf32>
    %c0_6 = arith.constant 0 : index
    %c0_7 = arith.constant 0 : index
    %c0_8 = arith.constant 0 : index
    %6 = vector.load %arg3[%c0_6, %c0_7, %c0_8] : memref<3x32x64xf32, #tpu.memory_space<vmem>>, vector<1x32x64xf32>
    %7 = vector.shape_cast %6 : vector<1x32x64xf32> to vector<32x64xf32>
    %c1_9 = arith.constant 1 : index
    %c0_10 = arith.constant 0 : index
    %c0_11 = arith.constant 0 : index
    %8 = vector.load %arg3[%c1_9, %c0_10, %c0_11] : memref<3x32x64xf32, #tpu.memory_space<vmem>>, vector<1x32x64xf32>
    %9 = vector.shape_cast %8 : vector<1x32x64xf32> to vector<32x64xf32>
    %c2_12 = arith.constant 2 : index
    %c0_13 = arith.constant 0 : index
    %c0_14 = arith.constant 0 : index
    %10 = vector.load %arg3[%c2_12, %c0_13, %c0_14] : memref<3x32x64xf32, #tpu.memory_space<vmem>>, vector<1x32x64xf32>
    %11 = vector.shape_cast %10 : vector<1x32x64xf32> to vector<32x64xf32>
    %c0_15 = arith.constant 0 : index
    %c0_16 = arith.constant 0 : index
    %12 = vector.load %arg4[%c0_15, %c0_16] : memref<32x1xf32, #tpu.memory_space<vmem>>, vector<32x1xf32>
    %c0_17 = arith.constant 0 : index
    %c0_18 = arith.constant 0 : index
    %c0_19 = arith.constant 0 : index
    %13 = vector.load %arg1[%c0_17, %c0_18, %c0_19] : memref<2x64x16xf32, #tpu.memory_space<vmem>>, vector<1x64x16xf32>
    %14 = vector.shape_cast %13 : vector<1x64x16xf32> to vector<64x16xf32>
    %cst = arith.constant dense<0.000000e+00> : vector<64x8xf32>
    %15 = tpu.matmul %14, %1, %cst {dimension_numbers = #tpu.dot_dimension_numbers<[1], [0], [0], [1], [0, 0, 1, 1], [], []>} : vector<64x16xf32>, vector<16x8xf32>, vector<64x8xf32> -> vector<64x8xf32>
    %cst_20 = arith.constant dense<0.000000e+00> : vector<32x8xf32>
    %16 = tpu.matmul %7, %15, %cst_20 {dimension_numbers = #tpu.dot_dimension_numbers<[1], [0], [0], [1], [0, 0, 1, 1], [], []>} : vector<32x64xf32>, vector<64x8xf32>, vector<32x8xf32> -> vector<32x8xf32>
    %17 = vector.broadcast %12 : vector<32x1xf32> to vector<32x8xf32>
    %18 = arith.addf %17, %16 : vector<32x8xf32>
    %cst_21 = arith.constant dense<0.000000e+00> : vector<64x8xf32>
    %19 = tpu.matmul %14, %3, %cst_21 {dimension_numbers = #tpu.dot_dimension_numbers<[1], [0], [0], [1], [0, 0, 1, 1], [], []>} : vector<64x16xf32>, vector<16x8xf32>, vector<64x8xf32> -> vector<64x8xf32>
    %cst_22 = arith.constant dense<0.000000e+00> : vector<32x8xf32>
    %20 = tpu.matmul %9, %19, %cst_22 {dimension_numbers = #tpu.dot_dimension_numbers<[1], [0], [0], [1], [0, 0, 1, 1], [], []>} : vector<32x64xf32>, vector<64x8xf32>, vector<32x8xf32> -> vector<32x8xf32>
    %21 = arith.addf %18, %20 : vector<32x8xf32>
    %cst_23 = arith.constant dense<0.000000e+00> : vector<64x8xf32>
    %22 = tpu.matmul %14, %5, %cst_23 {dimension_numbers = #tpu.dot_dimension_numbers<[1], [0], [0], [1], [0, 0, 1, 1], [], []>} : vector<64x16xf32>, vector<16x8xf32>, vector<64x8xf32> -> vector<64x8xf32>
    %cst_24 = arith.constant dense<0.000000e+00> : vector<32x8xf32>
    %23 = tpu.matmul %11, %22, %cst_24 {dimension_numbers = #tpu.dot_dimension_numbers<[1], [0], [0], [1], [0, 0, 1, 1], [], []>} : vector<32x64xf32>, vector<64x8xf32>, vector<32x8xf32> -> vector<32x8xf32>
    %24 = arith.addf %21, %23 : vector<32x8xf32>
    %c0_25 = arith.constant 0 : index
    %c0_26 = arith.constant 0 : index
    %c0_27 = arith.constant 0 : index
    %25 = vector.load %arg5[%c0_25, %c0_26, %c0_27] : memref<2x32x8xf32, #tpu.memory_space<vmem>>, vector<1x32x8xf32>
    %26 = vector.shape_cast %25 : vector<1x32x8xf32> to vector<32x8xf32>
    %27 = vector.shape_cast %24 : vector<32x8xf32> to vector<1x32x8xf32>
    tpu.vector_store %arg5[%c0_25, %c0_26, %c0_27], %27 {strides = array<i32>} : memref<2x32x8xf32, #tpu.memory_space<vmem>>, vector<1x32x8xf32>,
    %c1_28 = arith.constant 1 : index
    %c0_29 = arith.constant 0 : index
    %c0_30 = arith.constant 0 : index
    %28 = vector.load %arg1[%c1_28, %c0_29, %c0_30] : memref<2x64x16xf32, #tpu.memory_space<vmem>>, vector<1x64x16xf32>
    %29 = vector.shape_cast %28 : vector<1x64x16xf32> to vector<64x16xf32>
    %cst_31 = arith.constant dense<0.000000e+00> : vector<64x8xf32>
    %30 = tpu.matmul %29, %1, %cst_31 {dimension_numbers = #tpu.dot_dimension_numbers<[1], [0], [0], [1], [0, 0, 1, 1], [], []>} : vector<64x16xf32>, vector<16x8xf32>, vector<64x8xf32> -> vector<64x8xf32>
    %cst_32 = arith.constant dense<0.000000e+00> : vector<32x8xf32>
    %31 = tpu.matmul %7, %30, %cst_32 {dimension_numbers = #tpu.dot_dimension_numbers<[1], [0], [0], [1], [0, 0, 1, 1], [], []>} : vector<32x64xf32>, vector<64x8xf32>, vector<32x8xf32> -> vector<32x8xf32>
    %32 = vector.broadcast %12 : vector<32x1xf32> to vector<32x8xf32>
    %33 = arith.addf %32, %31 : vector<32x8xf32>
    %cst_33 = arith.constant dense<0.000000e+00> : vector<64x8xf32>
    %34 = tpu.matmul %29, %3, %cst_33 {dimension_numbers = #tpu.dot_dimension_numbers<[1], [0], [0], [1], [0, 0, 1, 1], [], []>} : vector<64x16xf32>, vector<16x8xf32>, vector<64x8xf32> -> vector<64x8xf32>
    %cst_34 = arith.constant dense<0.000000e+00> : vector<32x8xf32>
    %35 = tpu.matmul %9, %34, %cst_34 {dimension_numbers = #tpu.dot_dimension_numbers<[1], [0], [0], [1], [0, 0, 1, 1], [], []>} : vector<32x64xf32>, vector<64x8xf32>, vector<32x8xf32> -> vector<32x8xf32>
    %36 = arith.addf %33, %35 : vector<32x8xf32>
    %cst_35 = arith.constant dense<0.000000e+00> : vector<64x8xf32>
    %37 = tpu.matmul %29, %5, %cst_35 {dimension_numbers = #tpu.dot_dimension_numbers<[1], [0], [0], [1], [0, 0, 1, 1], [], []>} : vector<64x16xf32>, vector<16x8xf32>, vector<64x8xf32> -> vector<64x8xf32>
    %cst_36 = arith.constant dense<0.000000e+00> : vector<32x8xf32>
    %38 = tpu.matmul %11, %37, %cst_36 {dimension_numbers = #tpu.dot_dimension_numbers<[1], [0], [0], [1], [0, 0, 1, 1], [], []>} : vector<32x64xf32>, vector<64x8xf32>, vector<32x8xf32> -> vector<32x8xf32>
    %39 = arith.addf %36, %38 : vector<32x8xf32>
    %c1_37 = arith.constant 1 : index
    %c0_38 = arith.constant 0 : index
    %c0_39 = arith.constant 0 : index
    %40 = vector.load %arg5[%c1_37, %c0_38, %c0_39] : memref<2x32x8xf32, #tpu.memory_space<vmem>>, vector<1x32x8xf32>
    %41 = vector.shape_cast %40 : vector<1x32x8xf32> to vector<32x8xf32>
    %42 = vector.shape_cast %39 : vector<32x8xf32> to vector<1x32x8xf32>
    tpu.vector_store %arg5[%c1_37, %c0_38, %c0_39], %42 {strides = array<i32>} : memref<2x32x8xf32, #tpu.memory_space<vmem>>, vector<1x32x8xf32>,
    return
  }
  func.func @transform_0(%arg0: i32) -> (i32, i32, i32) {
    %c0_i32 = arith.constant 0 : i32
    %c0_i32_0 = arith.constant 0 : i32
    %c0_i32_1 = arith.constant 0 : i32
    return %arg0, %c0_i32, %c0_i32_0 : i32, i32, i32
  }
  func.func @transform_1(%arg0: i32) -> (i32, i32, i32) {
    %c0_i32 = arith.constant 0 : i32
    %c0_i32_0 = arith.constant 0 : i32
    %c0_i32_1 = arith.constant 0 : i32
    %c0_i32_2 = arith.constant 0 : i32
    return %c0_i32, %c0_i32_0, %c0_i32_1 : i32, i32, i32
  }
  func.func @transform_2(%arg0: i32) -> (i32, i32, i32) {
    %c0_i32 = arith.constant 0 : i32
    %c0_i32_0 = arith.constant 0 : i32
    %c0_i32_1 = arith.constant 0 : i32
    %c0_i32_2 = arith.constant 0 : i32
    return %c0_i32, %c0_i32_0, %c0_i32_1 : i32, i32, i32
  }
  func.func @transform_3(%arg0: i32) -> (i32, i32) {
    %c0_i32 = arith.constant 0 : i32
    %c0_i32_0 = arith.constant 0 : i32
    %c0_i32_1 = arith.constant 0 : i32
    return %c0_i32, %c0_i32_0 : i32, i32
  }
  func.func @transform_4(%arg0: i32) -> (i32, i32, i32) {
    %c0_i32 = arith.constant 0 : i32
    %c0_i32_0 = arith.constant 0 : i32
    %c0_i32_1 = arith.constant 0 : i32
    return %arg0, %c0_i32, %c0_i32_0 : i32, i32, i32
  }
}

</mosaic_0001>

<llo_original>
// kernel: tpu_custom_call.1
$region0: #{tpu_custom_call.1}
  #allocation0 [shape = 'u32[]', space=smem, size = 0x4, offset = 0x4, fixed_abs, tag = 'smem constant byte address 0x4 - core index']
  #allocation1 [shape = 'u32[144,128]{1,0:T(1,128)}', space=vmem, size = 0x12000, scoped, tag = 'internal scratch']
  %s0 = inlined_call_operand.vmem [shape: f32[4,64,16], index: 0, kind: input, shape index: {}]
  %s1 = inlined_call_operand.vmem [shape: f32[3,16,8], index: 1, kind: input, shape index: {}]
  %s2 = inlined_call_operand.vmem [shape: f32[3,32,64], index: 2, kind: input, shape index: {}]
  %s3 = inlined_call_operand.vmem [shape: f32[32,1], index: 3, kind: input, shape index: {}]
  %s4 = inlined_call_operand.vmem [shape: f32[4,32,8], index: 4, kind: output, shape index: {}]
  %s5 = sld [smem:[#allocation0]]
  $region49: #{tpu_custom_call.1} parent=0
    _
  %s7 = ssub.s32 1, %s5
  %s8 = scalar_select 0, %s7, %s5
  loop: start=0, step=1, limit=4
  $region2: #{tpu_custom_call.1} parent=0 // loop_pre_header
    _
  $region3: #{tpu_custom_call.1} parent=0 // loop_header
    %s10 = sphi 0, %s14
    %p11 = scmp.ge.s32.totalorder %s10, 4
    %s20 = sphi 0, %s22
    %s23 = sphi 0, %s20
    %s24 = sphi 0, %s23
    %s40 = sphi 0, %s24
    %s44 = sphi 0, %s44
    %s46 = sphi 0, %s44
    %s47 = sphi 0, %s46
    %s61 = sphi 0, %s47
    %s65 = sphi 0, %s65
    %s67 = sphi 0, %s65
    %s68 = sphi 0, %s67
    %s82 = sphi 0, %s68
    %s86 = sphi 0, %s86
    %s88 = sphi 0, %s86
    %s89 = sphi 0, %s88
    %s103 = sphi 0, %s89
    %s109 = sphi 0, %s111
    %s112 = sphi 0, %s109
    %s113 = sphi 0, %s112
    %s129 = sphi 0, %s113
  $region4: #{tpu_custom_call.1} parent=0 // loop_header_branch
    %13 = sbr.rel (%p11) target = $region8
  $region5: #{tpu_custom_call.1} parent=0 // loop_body
    %s15 = ssub.s32 %s10, 1
    %s16 = ssub.s32 %s10, 2
    %s17 = sadd.s32 %s10, 1
    %s18 = ssub.s32 %s10, %s17
    %p19 = scmp.eq.s32.totalorder %s18, 0
    %s21 = sadd.s32 %s20, 1
    %s22 = scalar_select %p19, %s20, %s21
    %p25 = pneg %p19
    %p26 = scmp.eq.s32.totalorder %s10, 1
    %p27 = por %p25, %p26
    %p28 = scmp.ne.s32.totalorder %s20, %s23
    %p29 = scmp.eq.s32.totalorder %s10, 0
    %p30 = por %p28, %p29
    %p31 = scmp.ne.s32.totalorder %s20, %s23
    %p32 = scmp.eq.s32.totalorder %s15, 1
    %p33 = por %p31, %p32
    %p34 = scmp.ne.s32.totalorder %s23, %s24
    %p35 = scmp.eq.s32.totalorder %s15, 0
    %p36 = por %p34, %p35
    %p37 = scmp.ne.s32.totalorder %s23, %s24
    %p38 = scmp.eq.s32.totalorder %s16, 1
    %p39 = por %p37, %p38
    %p41 = scmp.ne.s32.totalorder %s24, %s40
    %p42 = scmp.eq.s32.totalorder %s16, 0
    %p43 = por %p41, %p42
    %s45 = sadd.s32 %s44, 1
    %p48 = scmp.eq.s32.totalorder %s10, 1
    %p49 = scmp.ne.s32.totalorder %s44, %s46
    %p50 = scmp.eq.s32.totalorder %s10, 0
    %p51 = por %p49, %p50
    %p52 = scmp.ne.s32.totalorder %s44, %s46
    %p53 = scmp.eq.s32.totalorder %s15, 1
    %p54 = por %p52, %p53
    %p55 = scmp.ne.s32.totalorder %s46, %s47
    %p56 = scmp.eq.s32.totalorder %s15, 0
    %p57 = por %p55, %p56
    %p58 = scmp.ne.s32.totalorder %s46, %s47
    %p59 = scmp.eq.s32.totalorder %s16, 1
    %p60 = por %p58, %p59
    %p62 = scmp.ne.s32.totalorder %s47, %s61
    %p63 = scmp.eq.s32.totalorder %s16, 0
    %p64 = por %p62, %p63
    %s66 = sadd.s32 %s65, 1
    %p69 = scmp.eq.s32.totalorder %s10, 1
    %p70 = scmp.ne.s32.totalorder %s65, %s67
    %p71 = scmp.eq.s32.totalorder %s10, 0
    %p72 = por %p70, %p71
    %p73 = scmp.ne.s32.totalorder %s65, %s67
    %p74 = scmp.eq.s32.totalorder %s15, 1
    %p75 = por %p73, %p74
    %p76 = scmp.ne.s32.totalorder %s67, %s68
    %p77 = scmp.eq.s32.totalorder %s15, 0
    %p78 = por %p76, %p77
    %p79 = scmp.ne.s32.totalorder %s67, %s68
    %p80 = scmp.eq.s32.totalorder %s16, 1
    %p81 = por %p79, %p80
    %p83 = scmp.ne.s32.totalorder %s68, %s82
    %p84 = scmp.eq.s32.totalorder %s16, 0
    %p85 = por %p83, %p84
    %s87 = sadd.s32 %s86, 1
    %p90 = scmp.eq.s32.totalorder %s10, 1
    %p91 = scmp.ne.s32.totalorder %s86, %s88
    %p92 = scmp.eq.s32.totalorder %s10, 0
    %p93 = por %p91, %p92
    %p94 = scmp.ne.s32.totalorder %s86, %s88
    %p95 = scmp.eq.s32.totalorder %s15, 1
    %p96 = por %p94, %p95
    %p97 = scmp.ne.s32.totalorder %s88, %s89
    %p98 = scmp.eq.s32.totalorder %s15, 0
    %p99 = por %p97, %p98
    %p100 = scmp.ne.s32.totalorder %s88, %s89
    %p101 = scmp.eq.s32.totalorder %s16, 1
    %p102 = por %p100, %p101
    %p104 = scmp.ne.s32.totalorder %s89, %s103
    %p105 = scmp.eq.s32.totalorder %s16, 0
    %p106 = por %p104, %p105
    %s107 = ssub.s32 %s10, %s17
    %p108 = scmp.eq.s32.totalorder %s107, 0
    %s110 = sadd.s32 %s109, 1
    %s111 = scalar_select %p108, %s109, %s110
    %p114 = pneg %p108
    %p115 = scmp.eq.s32.totalorder %s10, 1
    %p116 = por %p114, %p115
    %p117 = scmp.ne.s32.totalorder %s109, %s112
    %p118 = scmp.eq.s32.totalorder %s10, 0
    %p119 = por %p117, %p118
    %p120 = scmp.ne.s32.totalorder %s109, %s112
    %p121 = scmp.eq.s32.totalorder %s15, 1
    %p122 = por %p120, %p121
    %p123 = scmp.ne.s32.totalorder %s112, %s113
    %p124 = scmp.eq.s32.totalorder %s15, 0
    %p125 = por %p123, %p124
    %p126 = scmp.ne.s32.totalorder %s112, %s113
    %p127 = scmp.eq.s32.totalorder %s16, 1
    %p128 = por %p126, %p127
    %p130 = scmp.ne.s32.totalorder %s113, %s129
    %p131 = scmp.eq.s32.totalorder %s16, 0
    %p132 = por %p130, %p131
    %p133 = scmp.le.s32.totalorder 1, %s10
    %p134 = scmp.lt.s32.totalorder %s10, 3
    %p135 = pnand %p133, %p134
    %p136 = pneg %p135
    // Predicated region
    $region9: #{tpu_custom_call.1} parent=5 // pred_check
      _
    $region10: #{tpu_custom_call.1} parent=5 // pred_check_branch
      %138 = sbr.rel (%p135) target = $region12
    $region11: #{tpu_custom_call.1} parent=5 // pred_region
      %s139 = ssub.s32 %s10, 1
      // Predicated region
      $region13: #{tpu_custom_call.1} parent=11 // pred_check
        %p140 = pneg %p57
      $region14: #{tpu_custom_call.1} parent=11 // pred_check_branch
        %142 = sbr.rel (%p140) target = $region16
      $region15: #{tpu_custom_call.1} parent=11 // pred_region
        _
      $region16: #{tpu_custom_call.1} parent=11 // pred_fallthru
        _
      // Predicated region
      $region17: #{tpu_custom_call.1} parent=11 // pred_check
        %p143 = pneg %p78
      $region18: #{tpu_custom_call.1} parent=11 // pred_check_branch
        %145 = sbr.rel (%p143) target = $region20
      $region19: #{tpu_custom_call.1} parent=11 // pred_region
        _
      $region20: #{tpu_custom_call.1} parent=11 // pred_fallthru
        _
      // Predicated region
      $region21: #{tpu_custom_call.1} parent=11 // pred_check
        %p146 = pneg %p99
      $region22: #{tpu_custom_call.1} parent=11 // pred_check_branch
        %148 = sbr.rel (%p146) target = $region24
      $region23: #{tpu_custom_call.1} parent=11 // pred_region
        _
      $region24: #{tpu_custom_call.1} parent=11 // pred_fallthru
        _
    $region12: #{tpu_custom_call.1} parent=5 // pred_fallthru
      _
    %p149 = scmp.lt.s32.totalorder %s10, 2
    // Predicated region
    $region25: #{tpu_custom_call.1} parent=5 // pred_check
      %p150 = pneg %p149
    $region26: #{tpu_custom_call.1} parent=5 // pred_check_branch
      %152 = sbr.rel (%p150) target = $region28
    $region27: #{tpu_custom_call.1} parent=5 // pred_region
      // Predicated region
      $region29: #{tpu_custom_call.1} parent=27 // pred_check
        %p153 = pneg %p30
      $region30: #{tpu_custom_call.1} parent=27 // pred_check_branch
        %155 = sbr.rel (%p153) target = $region32
      $region31: #{tpu_custom_call.1} parent=27 // pred_region
        %s156 = smul.u32 2, %s10
        %p157 = scmp.lt.s32.totalorder %s156, 3
        %s158 = scalar_select %p157, %s156, 3
        %s159 = smul.addr %s158, 8
        %s160 = smul.addr %s159, 8
        %s161 = scalar_lea.vmem %s0, %s160
        %s162 = smul.u32 2, %s10
      $region32: #{tpu_custom_call.1} parent=27 // pred_fallthru
        _
    $region28: #{tpu_custom_call.1} parent=5 // pred_fallthru
      _
    %p163 = scmp.le.s32.totalorder 1, %s10
    %p164 = scmp.lt.s32.totalorder %s10, 3
    %p165 = pnand %p163, %p164
    %p166 = pneg %p165
    // Predicated region
    $region33: #{tpu_custom_call.1} parent=5 // pred_check
      _
    $region34: #{tpu_custom_call.1} parent=5 // pred_check_branch
      %168 = sbr.rel (%p165) target = $region36
    $region35: #{tpu_custom_call.1} parent=5 // pred_region
      %s169 = ssub.s32 %s10, 1
      %s170 = smul.u32 2, %s15
      %p171 = scmp.lt.s32.totalorder %s170, 3
      %s172 = scalar_select %p171, %s170, 3
      %s173 = smul.addr %s172, 8
      %s174 = smul.addr %s173, 8
      %s175 = scalar_lea.vmem %s0, %s174
      %p176 = pneg %p36
      %p177 = pneg %p33
      %p178 = pneg %p57
      %p179 = pneg %p54
      %p180 = pneg %p78
      %p181 = pneg %p75
      %p182 = pneg %p99
      %p183 = pneg %p96
      %p184 = pneg %p125
      %p185 = pneg %p122
      %s186 = smul.u32 2, %s15
      %p187 = scmp.lt.s32.totalorder %s186, 3
      %s188 = scalar_select %p187, %s186, 3
      %s189 = smul.addr %s188, 4
      %s190 = smul.addr %s189, 8
      %s191 = scalar_lea.vmem %s4, %s190
      %s192 = smul.u32 2, %s15
      %p193 = scmp.lt.s32.totalorder %s192, 3
      %s194 = scalar_select %p193, %s192, 3
      %s195 = smul.addr %s194, 8
      %s196 = smul.addr %s195, 8
      %s197 = scalar_lea.vmem %s0, %s196
      %s198 = smul.u32 2, %s15
      %s199 = smul.u32 2, %s15
      %p200 = scmp.lt.s32.totalorder %s199, 3
      %s201 = scalar_select %p200, %s199, 3
      %s202 = smul.addr %s201, 4
      %s203 = smul.addr %s202, 8
      %s204 = scalar_lea.vmem %s4, %s203
      %s205 = smul.u32 2, %s15
      %v206 = vld [vmem:[%s1] sm:$0xff]
      %v207 = vld [vmem:[%s1 + $0x8] sm:$0xff]
      %s208 = scalar_lea.vmem %s1, 16
      %v209 = vld [vmem:[%s208] sm:$0xff]
      %v210 = vld [vmem:[%s208 + $0x8] sm:$0xff]
      %s211 = scalar_lea.vmem %s1, 32
      %v212 = vld [vmem:[%s211] sm:$0xff]
      %v213 = vld [vmem:[%s211 + $0x8] sm:$0xff]
      %v214 = vld [vmem:[%s2] sm:$0xff]
      %v215 = vld [vmem:[%s2 + $0x8] sm:$0xff]
      %v216 = vld [vmem:[%s2 + $0x10] sm:$0xff]
      %v217 = vld [vmem:[%s2 + $0x18] sm:$0xff]
      %s218 = scalar_lea.vmem %s2, 32
      %v219 = vld [vmem:[%s218] sm:$0xff]
      %v220 = vld [vmem:[%s218 + $0x8] sm:$0xff]
      %v221 = vld [vmem:[%s218 + $0x10] sm:$0xff]
      %v222 = vld [vmem:[%s218 + $0x18] sm:$0xff]
      %s223 = scalar_lea.vmem %s2, 64
      %v224 = vld [vmem:[%s223] sm:$0xff]
      %v225 = vld [vmem:[%s223 + $0x8] sm:$0xff]
      %v226 = vld [vmem:[%s223 + $0x10] sm:$0xff]
      %v227 = vld [vmem:[%s223 + $0x18] sm:$0xff]
      %v228 = vld [vmem:[%s3] sm:$0xff]
      %v229 = vld [vmem:[%s3 + $0x8] sm:$0xff]
      %v230 = vld [vmem:[%s3 + $0x10] sm:$0xff]
      %v231 = vld [vmem:[%s3 + $0x18] sm:$0xff]
      %v232 = vld [vmem:[%s197] sm:$0xff]
      %v233 = vld [vmem:[%s197 + $0x8] sm:$0xff]
      %v234 = vld [vmem:[%s197 + $0x10] sm:$0xff]
      %v235 = vld [vmem:[%s197 + $0x18] sm:$0xff]
      %v236 = vld [vmem:[%s197 + $0x20] sm:$0xff]
      %v237 = vld [vmem:[%s197 + $0x28] sm:$0xff]
      %v238 = vld [vmem:[%s197 + $0x30] sm:$0xff]
      %v239 = vld [vmem:[%s197 + $0x38] sm:$0xff]
      %vm240 = vcmask 130048
      %v242 = vsel %vm240, %v232, 0
      %v245 = vsel %vm240, %v233, 0
      %v248 = vsel %vm240, %v234, 0
      %v251 = vsel %vm240, %v235, 0
      %v254 = vsel %vm240, %v236, 0
      %v257 = vsel %vm240, %v237, 0
      %v260 = vsel %vm240, %v238, 0
      %v263 = vsel %vm240, %v239, 0
      %265 = vmatprep.subr.mxu0 0.0
      %266 = vmatpush1.msra.mxu0 0.0
      %267 = vmatprep.subr.mxu0 0.0
      %268 = vmatpush1.msra.mxu0 0.0
      %269 = vmatprep.subr.mxu0 0.0
      %270 = vmatpush1.msra.mxu0 0.0
      %271 = vmatprep.subr.mxu0 0.0
      %272 = vmatpush1.msra.mxu0 0.0
      %273 = vmatprep.subr.mxu0 0.0
      %274 = vmatpush1.msra.mxu0 0.0
      %275 = vmatprep.subr.mxu0 0.0
      %276 = vmatpush1.msra.mxu0 0.0
      %277 = vmatprep.subr.mxu0 0.0
      %278 = vmatpush1.msra.mxu0 0.0
      %279 = vmatprep.subr.mxu0 0.0
      %280 = vmatpush1.msra.mxu0 0.0
      %281 = vmatprep.subr.mxu0 0.0
      %282 = vmatpush1.msra.mxu0 0.0
      %283 = vmatprep.subr.mxu0 0.0
      %284 = vmatpush1.msra.mxu0 0.0
      %285 = vmatprep.subr.mxu0 0.0
      %286 = vmatpush1.msra.mxu0 0.0
      %287 = vmatprep.subr.mxu0 0.0
      %288 = vmatpush1.msra.mxu0 0.0
      %289 = vmatprep.subr.mxu0 0.0
      %290 = vmatpush1.msra.mxu0 0.0
      %291 = vmatprep.subr.mxu0 0.0
      %292 = vmatpush1.msra.mxu0 0.0
      %293 = vmatprep.subr.mxu0 0.0
      %294 = vmatpush1.msra.mxu0 %v207
      %295 = vmatprep.subr.mxu0 0.0
      %296 = vmatpush1.msra.mxu0 %v206
      %297 = vmatprep.subr.mxu0 0.0
      %298 = vmatpush2.msra.mxu0 0.0
      %299 = vmatprep.subr.mxu0 0.0
      %300 = vmatpush2.msra.mxu0 0.0
      %301 = vmatprep.subr.mxu0 0.0
      %302 = vmatpush2.msra.mxu0 0.0
      %303 = vmatprep.subr.mxu0 0.0
      %304 = vmatpush2.msra.mxu0 0.0
      %305 = vmatprep.subr.mxu0 0.0
      %306 = vmatpush2.msra.mxu0 0.0
      %307 = vmatprep.subr.mxu0 0.0
      %308 = vmatpush2.msra.mxu0 0.0
      %309 = vmatprep.subr.mxu0 0.0
      %310 = vmatpush2.msra.mxu0 0.0
      %311 = vmatprep.subr.mxu0 0.0
      %312 = vmatpush2.msra.mxu0 0.0
      %313 = vmatprep.subr.mxu0 0.0
      %314 = vmatpush2.msra.mxu0 0.0
      %315 = vmatprep.subr.mxu0 0.0
      %316 = vmatpush2.msra.mxu0 0.0
      %317 = vmatprep.subr.mxu0 0.0
      %318 = vmatpush2.msra.mxu0 0.0
      %319 = vmatprep.subr.mxu0 0.0
      %320 = vmatpush2.msra.mxu0 0.0
      %321 = vmatprep.subr.mxu0 0.0
      %322 = vmatpush2.msra.mxu0 0.0
      %323 = vmatprep.subr.mxu0 0.0
      %324 = vmatpush2.msra.mxu0 0.0
      %325 = vmatprep.subr.mxu0 0.0
      %326 = vmatpush2.msra.mxu0 0.0
      %327 = vmatprep.subr.mxu0 0.0
      %328 = vmatpush2.msra.mxu0 0.0
      %329 = vmatprep.mubr.f32.mxu0 0.0
      %330 = vmatmul.mubr.f32.gmra.mxu0 %v242
      %v331 = vpop.f32.mrf.mxu0
      %v332 = vadd.f32 0.0, %v331
      %v333 = vpop.f32.mrf.mxu0
      %334 = vmatprep.mubr.f32.mxu0 0.0
      %335 = vmatmul.mubr.f32.gmra.mxu0 %v245
      %v336 = vpop.f32.mrf.mxu0
      %v337 = vadd.f32 0.0, %v336
      %v338 = vpop.f32.mrf.mxu0
      %339 = vmatprep.mubr.f32.mxu0 0.0
      %340 = vmatmul.mubr.f32.gmra.mxu0 %v248
      %v341 = vpop.f32.mrf.mxu0
      %v342 = vadd.f32 0.0, %v341
      %v343 = vpop.f32.mrf.mxu0
      %344 = vmatprep.mubr.f32.mxu0 0.0
      %345 = vmatmul.mubr.f32.gmra.mxu0 %v251
      %v346 = vpop.f32.mrf.mxu0
      %v347 = vadd.f32 0.0, %v346
      %v348 = vpop.f32.mrf.mxu0
      %349 = vmatprep.mubr.f32.mxu0 0.0
      %350 = vmatmul.mubr.f32.gmra.mxu0 %v254
      %v351 = vpop.f32.mrf.mxu0
      %v352 = vadd.f32 0.0, %v351
      %v353 = vpop.f32.mrf.mxu0
      %354 = vmatprep.mubr.f32.mxu0 0.0
      %355 = vmatmul.mubr.f32.gmra.mxu0 %v257
      %v356 = vpop.f32.mrf.mxu0
      %v357 = vadd.f32 0.0, %v356
      %v358 = vpop.f32.mrf.mxu0
      %359 = vmatprep.mubr.f32.mxu0 0.0
      %360 = vmatmul.mubr.f32.gmra.mxu0 %v260
      %v361 = vpop.f32.mrf.mxu0
      %v362 = vadd.f32 0.0, %v361
      %v363 = vpop.f32.mrf.mxu0
      %364 = vmatprep.mubr.f32.mxu0 0.0
      %365 = vmatmul.mubr.f32.gmra.mxu0 %v263
      %v366 = vpop.f32.mrf.mxu0
      %v367 = vadd.f32 0.0, %v366
      %v368 = vpop.f32.mrf.mxu0
      %369 = vdwg.mxu0
      %vm370 = vcmask 523264
      %v372 = vsel %vm370, %v214, 0
      %v375 = vsel %vm370, %v215, 0
      %v378 = vsel %vm370, %v216, 0
      %v381 = vsel %vm370, %v217, 0
      %383 = vmatprep.subr.mxu0 0.0
      %384 = vmatpush1.msra.mxu0 0.0
      %385 = vmatprep.subr.mxu0 0.0
      %386 = vmatpush1.msra.mxu0 0.0
      %387 = vmatprep.subr.mxu0 0.0
      %388 = vmatpush1.msra.mxu0 0.0
      %389 = vmatprep.subr.mxu0 0.0
      %390 = vmatpush1.msra.mxu0 0.0
      %391 = vmatprep.subr.mxu0 0.0
      %392 = vmatpush1.msra.mxu0 0.0
      %393 = vmatprep.subr.mxu0 0.0
      %394 = vmatpush1.msra.mxu0 0.0
      %395 = vmatprep.subr.mxu0 0.0
      %396 = vmatpush1.msra.mxu0 0.0
      %397 = vmatprep.subr.mxu0 0.0
      %398 = vmatpush1.msra.mxu0 0.0
      %399 = vmatprep.subr.mxu0 0.0
      %400 = vmatpush1.msra.mxu0 %v367
      %401 = vmatprep.subr.mxu0 0.0
      %402 = vmatpush1.msra.mxu0 %v362
      %403 = vmatprep.subr.mxu0 0.0
      %404 = vmatpush1.msra.mxu0 %v357
      %405 = vmatprep.subr.mxu0 0.0
      %406 = vmatpush1.msra.mxu0 %v352
      %407 = vmatprep.subr.mxu0 0.0
      %408 = vmatpush1.msra.mxu0 %v347
      %409 = vmatprep.subr.mxu0 0.0
      %410 = vmatpush1.msra.mxu0 %v342
      %411 = vmatprep.subr.mxu0 0.0
      %412 = vmatpush1.msra.mxu0 %v337
      %413 = vmatprep.subr.mxu0 0.0
      %414 = vmatpush1.msra.mxu0 %v332
      %415 = vmatprep.subr.mxu0 0.0
      %416 = vmatpush2.msra.mxu0 0.0
      %417 = vmatprep.subr.mxu0 0.0
      %418 = vmatpush2.msra.mxu0 0.0
      %419 = vmatprep.subr.mxu0 0.0
      %420 = vmatpush2.msra.mxu0 0.0
      %421 = vmatprep.subr.mxu0 0.0
      %422 = vmatpush2.msra.mxu0 0.0
      %423 = vmatprep.subr.mxu0 0.0
      %424 = vmatpush2.msra.mxu0 0.0
      %425 = vmatprep.subr.mxu0 0.0
      %426 = vmatpush2.msra.mxu0 0.0
      %427 = vmatprep.subr.mxu0 0.0
      %428 = vmatpush2.msra.mxu0 0.0
      %429 = vmatprep.subr.mxu0 0.0
      %430 = vmatpush2.msra.mxu0 0.0
      %431 = vmatprep.subr.mxu0 0.0
      %432 = vmatpush2.msra.mxu0 0.0
      %433 = vmatprep.subr.mxu0 0.0
      %434 = vmatpush2.msra.mxu0 0.0
      %435 = vmatprep.subr.mxu0 0.0
      %436 = vmatpush2.msra.mxu0 0.0
      %437 = vmatprep.subr.mxu0 0.0
      %438 = vmatpush2.msra.mxu0 0.0
      %439 = vmatprep.subr.mxu0 0.0
      %440 = vmatpush2.msra.mxu0 0.0
      %441 = vmatprep.subr.mxu0 0.0
      %442 = vmatpush2.msra.mxu0 0.0
      %443 = vmatprep.subr.mxu0 0.0
      %444 = vmatpush2.msra.mxu0 0.0
      %445 = vmatprep.subr.mxu0 0.0
      %446 = vmatpush2.msra.mxu0 0.0
      %447 = vmatprep.mubr.f32.mxu0 0.0
      %448 = vmatmul.mubr.f32.gmra.mxu0 %v372
      %v449 = vpop.f32.mrf.mxu0
      %v450 = vadd.f32 0.0, %v449
      %v451 = vpop.f32.mrf.mxu0
      %452 = vmatprep.mubr.f32.mxu0 0.0
      %453 = vmatmul.mubr.f32.gmra.mxu0 %v375
      %v454 = vpop.f32.mrf.mxu0
      %v455 = vadd.f32 0.0, %v454
      %v456 = vpop.f32.mrf.mxu0
      %457 = vmatprep.mubr.f32.mxu0 0.0
      %458 = vmatmul.mubr.f32.gmra.mxu0 %v378
      %v459 = vpop.f32.mrf.mxu0
      %v460 = vadd.f32 0.0, %v459
      %v461 = vpop.f32.mrf.mxu0
      %462 = vmatprep.mubr.f32.mxu0 0.0
      %463 = vmatmul.mubr.f32.gmra.mxu0 %v381
      %v464 = vpop.f32.mrf.mxu0
      %v465 = vadd.f32 0.0, %v464
      %v466 = vpop.f32.mrf.mxu0
      %467 = vdwg.mxu0
      %469 = vset.pattern.permute.xlu0 0
      %470 = vperm.xlu0 %469, %v228
      %v471 = vpop.permute.xlu0 %470
      %474 = vset.pattern.permute.xlu0 0
      %475 = vperm.xlu0 %474, %v229
      %v476 = vpop.permute.xlu0 %475
      %479 = vset.pattern.permute.xlu0 0
      %480 = vperm.xlu0 %479, %v230
      %v481 = vpop.permute.xlu0 %480
      %484 = vset.pattern.permute.xlu0 0
      %485 = vperm.xlu0 %484, %v231
      %v486 = vpop.permute.xlu0 %485
      %v488 = vadd.f32 %v471, %v450
      %v489 = vadd.f32 %v476, %v455
      %v490 = vadd.f32 %v481, %v460
      %v491 = vadd.f32 %v486, %v465
      %492 = vmatprep.subr.mxu0 0.0
      %493 = vmatpush1.msra.mxu0 0.0
      %494 = vmatprep.subr.mxu0 0.0
      %495 = vmatpush1.msra.mxu0 0.0
      %496 = vmatprep.subr.mxu0 0.0
      %497 = vmatpush1.msra.mxu0 0.0
      %498 = vmatprep.subr.mxu0 0.0
      %499 = vmatpush1.msra.mxu0 0.0
      %500 = vmatprep.subr.mxu0 0.0
      %501 = vmatpush1.msra.mxu0 0.0
      %502 = vmatprep.subr.mxu0 0.0
      %503 = vmatpush1.msra.mxu0 0.0
      %504 = vmatprep.subr.mxu0 0.0
      %505 = vmatpush1.msra.mxu0 0.0
      %506 = vmatprep.subr.mxu0 0.0
      %507 = vmatpush1.msra.mxu0 0.0
      %508 = vmatprep.subr.mxu0 0.0
      %509 = vmatpush1.msra.mxu0 0.0
      %510 = vmatprep.subr.mxu0 0.0
      %511 = vmatpush1.msra.mxu0 0.0
      %512 = vmatprep.subr.mxu0 0.0
      %513 = vmatpush1.msra.mxu0 0.0
      %514 = vmatprep.subr.mxu0 0.0
      %515 = vmatpush1.msra.mxu0 0.0
      %516 = vmatprep.subr.mxu0 0.0
      %517 = vmatpush1.msra.mxu0 0.0
      %518 = vmatprep.subr.mxu0 0.0
      %519 = vmatpush1.msra.mxu0 0.0
      %520 = vmatprep.subr.mxu0 0.0
      %521 = vmatpush1.msra.mxu0 %v210
      %522 = vmatprep.subr.mxu0 0.0
      %523 = vmatpush1.msra.mxu0 %v209
      %524 = vmatprep.subr.mxu0 0.0
      %525 = vmatpush2.msra.mxu0 0.0
      %526 = vmatprep.subr.mxu0 0.0
      %527 = vmatpush2.msra.mxu0 0.0
      %528 = vmatprep.subr.mxu0 0.0
      %529 = vmatpush2.msra.mxu0 0.0
      %530 = vmatprep.subr.mxu0 0.0
      %531 = vmatpush2.msra.mxu0 0.0
      %532 = vmatprep.subr.mxu0 0.0
      %533 = vmatpush2.msra.mxu0 0.0
      %534 = vmatprep.subr.mxu0 0.0
      %535 = vmatpush2.msra.mxu0 0.0
      %536 = vmatprep.subr.mxu0 0.0
      %537 = vmatpush2.msra.mxu0 0.0
      %538 = vmatprep.subr.mxu0 0.0
      %539 = vmatpush2.msra.mxu0 0.0
      %540 = vmatprep.subr.mxu0 0.0
      %541 = vmatpush2.msra.mxu0 0.0
      %542 = vmatprep.subr.mxu0 0.0
      %543 = vmatpush2.msra.mxu0 0.0
      %544 = vmatprep.subr.mxu0 0.0
      %545 = vmatpush2.msra.mxu0 0.0
      %546 = vmatprep.subr.mxu0 0.0
      %547 = vmatpush2.msra.mxu0 0.0
      %548 = vmatprep.subr.mxu0 0.0
      %549 = vmatpush2.msra.mxu0 0.0
      %550 = vmatprep.subr.mxu0 0.0
      %551 = vmatpush2.msra.mxu0 0.0
      %552 = vmatprep.subr.mxu0 0.0
      %553 = vmatpush2.msra.mxu0 0.0
      %554 = vmatprep.subr.mxu0 0.0
      %555 = vmatpush2.msra.mxu0 0.0
      %556 = vmatprep.mubr.f32.mxu0 0.0
      %557 = vmatmul.mubr.f32.gmra.mxu0 %v242
      %v558 = vpop.f32.mrf.mxu0
      %v559 = vadd.f32 0.0, %v558
      %v560 = vpop.f32.mrf.mxu0
      %561 = vmatprep.mubr.f32.mxu0 0.0
      %562 = vmatmul.mubr.f32.gmra.mxu0 %v245
      %v563 = vpop.f32.mrf.mxu0
      %v564 = vadd.f32 0.0, %v563
      %v565 = vpop.f32.mrf.mxu0
      %566 = vmatprep.mubr.f32.mxu0 0.0
      %567 = vmatmul.mubr.f32.gmra.mxu0 %v248
      %v568 = vpop.f32.mrf.mxu0
      %v569 = vadd.f32 0.0, %v568
      %v570 = vpop.f32.mrf.mxu0
      %571 = vmatprep.mubr.f32.mxu0 0.0
      %572 = vmatmul.mubr.f32.gmra.mxu0 %v251
      %v573 = vpop.f32.mrf.mxu0
      %v574 = vadd.f32 0.0, %v573
      %v575 = vpop.f32.mrf.mxu0
      %576 = vmatprep.mubr.f32.mxu0 0.0
      %577 = vmatmul.mubr.f32.gmra.mxu0 %v254
      %v578 = vpop.f32.mrf.mxu0
      %v579 = vadd.f32 0.0, %v578
      %v580 = vpop.f32.mrf.mxu0
      %581 = vmatprep.mubr.f32.mxu0 0.0
      %582 = vmatmul.mubr.f32.gmra.mxu0 %v257
      %v583 = vpop.f32.mrf.mxu0
      %v584 = vadd.f32 0.0, %v583
      %v585 = vpop.f32.mrf.mxu0
      %586 = vmatprep.mubr.f32.mxu0 0.0
      %587 = vmatmul.mubr.f32.gmra.mxu0 %v260
      %v588 = vpop.f32.mrf.mxu0
      %v589 = vadd.f32 0.0, %v588
      %v590 = vpop.f32.mrf.mxu0
      %591 = vmatprep.mubr.f32.mxu0 0.0
      %592 = vmatmul.mubr.f32.gmra.mxu0 %v263
      %v593 = vpop.f32.mrf.mxu0
      %v594 = vadd.f32 0.0, %v593
      %v595 = vpop.f32.mrf.mxu0
      %596 = vdwg.mxu0
      %v598 = vsel %vm370, %v219, 0
      %v601 = vsel %vm370, %v220, 0
      %v604 = vsel %vm370, %v221, 0
      %v607 = vsel %vm370, %v222, 0
      %609 = vmatprep.subr.mxu0 0.0
      %610 = vmatpush1.msra.mxu0 0.0
      %611 = vmatprep.subr.mxu0 0.0
      %612 = vmatpush1.msra.mxu0 0.0
      %613 = vmatprep.subr.mxu0 0.0
      %614 = vmatpush1.msra.mxu0 0.0
      %615 = vmatprep.subr.mxu0 0.0
      %616 = vmatpush1.msra.mxu0 0.0
      %617 = vmatprep.subr.mxu0 0.0
      %618 = vmatpush1.msra.mxu0 0.0
      %619 = vmatprep.subr.mxu0 0.0
      %620 = vmatpush1.msra.mxu0 0.0
      %621 = vmatprep.subr.mxu0 0.0
      %622 = vmatpush1.msra.mxu0 0.0
      %623 = vmatprep.subr.mxu0 0.0
      %624 = vmatpush1.msra.mxu0 0.0
      %625 = vmatprep.subr.mxu0 0.0
      %626 = vmatpush1.msra.mxu0 %v594
      %627 = vmatprep.subr.mxu0 0.0
      %628 = vmatpush1.msra.mxu0 %v589
      %629 = vmatprep.subr.mxu0 0.0
      %630 = vmatpush1.msra.mxu0 %v584
      %631 = vmatprep.subr.mxu0 0.0
      %632 = vmatpush1.msra.mxu0 %v579
      %633 = vmatprep.subr.mxu0 0.0
      %634 = vmatpush1.msra.mxu0 %v574
      %635 = vmatprep.subr.mxu0 0.0
      %636 = vmatpush1.msra.mxu0 %v569
      %637 = vmatprep.subr.mxu0 0.0
      %638 = vmatpush1.msra.mxu0 %v564
      %639 = vmatprep.subr.mxu0 0.0
      %640 = vmatpush1.msra.mxu0 %v559
      %641 = vmatprep.subr.mxu0 0.0
      %642 = vmatpush2.msra.mxu0 0.0
      %643 = vmatprep.subr.mxu0 0.0
      %644 = vmatpush2.msra.mxu0 0.0
      %645 = vmatprep.subr.mxu0 0.0
      %646 = vmatpush2.msra.mxu0 0.0
      %647 = vmatprep.subr.mxu0 0.0
      %648 = vmatpush2.msra.mxu0 0.0
      %649 = vmatprep.subr.mxu0 0.0
      %650 = vmatpush2.msra.mxu0 0.0
      %651 = vmatprep.subr.mxu0 0.0
      %652 = vmatpush2.msra.mxu0 0.0
      %653 = vmatprep.subr.mxu0 0.0
      %654 = vmatpush2.msra.mxu0 0.0
      %655 = vmatprep.subr.mxu0 0.0
      %656 = vmatpush2.msra.mxu0 0.0
      %657 = vmatprep.subr.mxu0 0.0
      %658 = vmatpush2.msra.mxu0 0.0
      %659 = vmatprep.subr.mxu0 0.0
      %660 = vmatpush2.msra.mxu0 0.0
      %661 = vmatprep.subr.mxu0 0.0
      %662 = vmatpush2.msra.mxu0 0.0
      %663 = vmatprep.subr.mxu0 0.0
      %664 = vmatpush2.msra.mxu0 0.0
      %665 = vmatprep.subr.mxu0 0.0
      %666 = vmatpush2.msra.mxu0 0.0
      %667 = vmatprep.subr.mxu0 0.0
      %668 = vmatpush2.msra.mxu0 0.0
      %669 = vmatprep.subr.mxu0 0.0
      %670 = vmatpush2.msra.mxu0 0.0
      %671 = vmatprep.subr.mxu0 0.0
      %672 = vmatpush2.msra.mxu0 0.0
      %673 = vmatprep.mubr.f32.mxu0 0.0
      %674 = vmatmul.mubr.f32.gmra.mxu0 %v598
      %v675 = vpop.f32.mrf.mxu0
      %v676 = vadd.f32 0.0, %v675
      %v677 = vpop.f32.mrf.mxu0
      %678 = vmatprep.mubr.f32.mxu0 0.0
      %679 = vmatmul.mubr.f32.gmra.mxu0 %v601
      %v680 = vpop.f32.mrf.mxu0
      %v681 = vadd.f32 0.0, %v680
      %v682 = vpop.f32.mrf.mxu0
      %683 = vmatprep.mubr.f32.mxu0 0.0
      %684 = vmatmul.mubr.f32.gmra.mxu0 %v604
      %v685 = vpop.f32.mrf.mxu0
      %v686 = vadd.f32 0.0, %v685
      %v687 = vpop.f32.mrf.mxu0
      %688 = vmatprep.mubr.f32.mxu0 0.0
      %689 = vmatmul.mubr.f32.gmra.mxu0 %v607
      %v690 = vpop.f32.mrf.mxu0
      %v691 = vadd.f32 0.0, %v690
      %v692 = vpop.f32.mrf.mxu0
      %693 = vdwg.mxu0
      %v694 = vadd.f32 %v488, %v676
      %v695 = vadd.f32 %v489, %v681
      %v696 = vadd.f32 %v490, %v686
      %v697 = vadd.f32 %v491, %v691
      %698 = vmatprep.subr.mxu0 0.0
      %699 = vmatpush1.msra.mxu0 0.0
      %700 = vmatprep.subr.mxu0 0.0
      %701 = vmatpush1.msra.mxu0 0.0
      %702 = vmatprep.subr.mxu0 0.0
      %703 = vmatpush1.msra.mxu0 0.0
      %704 = vmatprep.subr.mxu0 0.0
      %705 = vmatpush1.msra.mxu0 0.0
      %706 = vmatprep.subr.mxu0 0.0
      %707 = vmatpush1.msra.mxu0 0.0
      %708 = vmatprep.subr.mxu0 0.0
      %709 = vmatpush1.msra.mxu0 0.0
      %710 = vmatprep.subr.mxu0 0.0
      %711 = vmatpush1.msra.mxu0 0.0
      %712 = vmatprep.subr.mxu0 0.0
      %713 = vmatpush1.msra.mxu0 0.0
      %714 = vmatprep.subr.mxu0 0.0
      %715 = vmatpush1.msra.mxu0 0.0
      %716 = vmatprep.subr.mxu0 0.0
      %717 = vmatpush1.msra.mxu0 0.0
      %718 = vmatprep.subr.mxu0 0.0
      %719 = vmatpush1.msra.mxu0 0.0
      %720 = vmatprep.subr.mxu0 0.0
      %721 = vmatpush1.msra.mxu0 0.0
      %722 = vmatprep.subr.mxu0 0.0
      %723 = vmatpush1.msra.mxu0 0.0
      %724 = vmatprep.subr.mxu0 0.0
      %725 = vmatpush1.msra.mxu0 0.0
      %726 = vmatprep.subr.mxu0 0.0
      %727 = vmatpush1.msra.mxu0 %v213
      %728 = vmatprep.subr.mxu0 0.0
      %729 = vmatpush1.msra.mxu0 %v212
      %730 = vmatprep.subr.mxu0 0.0
      %731 = vmatpush2.msra.mxu0 0.0
      %732 = vmatprep.subr.mxu0 0.0
      %733 = vmatpush2.msra.mxu0 0.0
      %734 = vmatprep.subr.mxu0 0.0
      %735 = vmatpush2.msra.mxu0 0.0
      %736 = vmatprep.subr.mxu0 0.0
      %737 = vmatpush2.msra.mxu0 0.0
      %738 = vmatprep.subr.mxu0 0.0
      %739 = vmatpush2.msra.mxu0 0.0
      %740 = vmatprep.subr.mxu0 0.0
      %741 = vmatpush2.msra.mxu0 0.0
      %742 = vmatprep.subr.mxu0 0.0
      %743 = vmatpush2.msra.mxu0 0.0
      %744 = vmatprep.subr.mxu0 0.0
      %745 = vmatpush2.msra.mxu0 0.0
      %746 = vmatprep.subr.mxu0 0.0
      %747 = vmatpush2.msra.mxu0 0.0
      %748 = vmatprep.subr.mxu0 0.0
      %749 = vmatpush2.msra.mxu0 0.0
      %750 = vmatprep.subr.mxu0 0.0
      %751 = vmatpush2.msra.mxu0 0.0
      %752 = vmatprep.subr.mxu0 0.0
      %753 = vmatpush2.msra.mxu0 0.0
      %754 = vmatprep.subr.mxu0 0.0
      %755 = vmatpush2.msra.mxu0 0.0
      %756 = vmatprep.subr.mxu0 0.0
      %757 = vmatpush2.msra.mxu0 0.0
      %758 = vmatprep.subr.mxu0 0.0
      %759 = vmatpush2.msra.mxu0 0.0
      %760 = vmatprep.subr.mxu0 0.0
      %761 = vmatpush2.msra.mxu0 0.0
      %762 = vmatprep.mubr.f32.mxu0 0.0
      %763 = vmatmul.mubr.f32.gmra.mxu0 %v242
      %v764 = vpop.f32.mrf.mxu0
      %v765 = vadd.f32 0.0, %v764
      %v766 = vpop.f32.mrf.mxu0
      %767 = vmatprep.mubr.f32.mxu0 0.0
      %768 = vmatmul.mubr.f32.gmra.mxu0 %v245
      %v769 = vpop.f32.mrf.mxu0
      %v770 = vadd.f32 0.0, %v769
      %v771 = vpop.f32.mrf.mxu0
      %772 = vmatprep.mubr.f32.mxu0 0.0
      %773 = vmatmul.mubr.f32.gmra.mxu0 %v248
      %v774 = vpop.f32.mrf.mxu0
      %v775 = vadd.f32 0.0, %v774
      %v776 = vpop.f32.mrf.mxu0
      %777 = vmatprep.mubr.f32.mxu0 0.0
      %778 = vmatmul.mubr.f32.gmra.mxu0 %v251
      %v779 = vpop.f32.mrf.mxu0
      %v780 = vadd.f32 0.0, %v779
      %v781 = vpop.f32.mrf.mxu0
      %782 = vmatprep.mubr.f32.mxu0 0.0
      %783 = vmatmul.mubr.f32.gmra.mxu0 %v254
      %v784 = vpop.f32.mrf.mxu0
      %v785 = vadd.f32 0.0, %v784
      %v786 = vpop.f32.mrf.mxu0
      %787 = vmatprep.mubr.f32.mxu0 0.0
      %788 = vmatmul.mubr.f32.gmra.mxu0 %v257
      %v789 = vpop.f32.mrf.mxu0
      %v790 = vadd.f32 0.0, %v789
      %v791 = vpop.f32.mrf.mxu0
      %792 = vmatprep.mubr.f32.mxu0 0.0
      %793 = vmatmul.mubr.f32.gmra.mxu0 %v260
      %v794 = vpop.f32.mrf.mxu0
      %v795 = vadd.f32 0.0, %v794
      %v796 = vpop.f32.mrf.mxu0
      %797 = vmatprep.mubr.f32.mxu0 0.0
      %798 = vmatmul.mubr.f32.gmra.mxu0 %v263
      %v799 = vpop.f32.mrf.mxu0
      %v800 = vadd.f32 0.0, %v799
      %v801 = vpop.f32.mrf.mxu0
      %802 = vdwg.mxu0
      %v804 = vsel %vm370, %v224, 0
      %v807 = vsel %vm370, %v225, 0
      %v810 = vsel %vm370, %v226, 0
      %v813 = vsel %vm370, %v227, 0
      %815 = vmatprep.subr.mxu0 0.0
      %816 = vmatpush1.msra.mxu0 0.0
      %817 = vmatprep.subr.mxu0 0.0
      %818 = vmatpush1.msra.mxu0 0.0
      %819 = vmatprep.subr.mxu0 0.0
      %820 = vmatpush1.msra.mxu0 0.0
      %821 = vmatprep.subr.mxu0 0.0
      %822 = vmatpush1.msra.mxu0 0.0
      %823 = vmatprep.subr.mxu0 0.0
      %824 = vmatpush1.msra.mxu0 0.0
      %825 = vmatprep.subr.mxu0 0.0
      %826 = vmatpush1.msra.mxu0 0.0
      %827 = vmatprep.subr.mxu0 0.0
      %828 = vmatpush1.msra.mxu0 0.0
      %829 = vmatprep.subr.mxu0 0.0
      %830 = vmatpush1.msra.mxu0 0.0
      %831 = vmatprep.subr.mxu0 0.0
      %832 = vmatpush1.msra.mxu0 %v800
      %833 = vmatprep.subr.mxu0 0.0
      %834 = vmatpush1.msra.mxu0 %v795
      %835 = vmatprep.subr.mxu0 0.0
      %836 = vmatpush1.msra.mxu0 %v790
      %837 = vmatprep.subr.mxu0 0.0
      %838 = vmatpush1.msra.mxu0 %v785
      %839 = vmatprep.subr.mxu0 0.0
      %840 = vmatpush1.msra.mxu0 %v780
      %841 = vmatprep.subr.mxu0 0.0
      %842 = vmatpush1.msra.mxu0 %v775
      %843 = vmatprep.subr.mxu0 0.0
      %844 = vmatpush1.msra.mxu0 %v770
      %845 = vmatprep.subr.mxu0 0.0
      %846 = vmatpush1.msra.mxu0 %v765
      %847 = vmatprep.subr.mxu0 0.0
      %848 = vmatpush2.msra.mxu0 0.0
      %849 = vmatprep.subr.mxu0 0.0
      %850 = vmatpush2.msra.mxu0 0.0
      %851 = vmatprep.subr.mxu0 0.0
      %852 = vmatpush2.msra.mxu0 0.0
      %853 = vmatprep.subr.mxu0 0.0
      %854 = vmatpush2.msra.mxu0 0.0
      %855 = vmatprep.subr.mxu0 0.0
      %856 = vmatpush2.msra.mxu0 0.0
      %857 = vmatprep.subr.mxu0 0.0
      %858 = vmatpush2.msra.mxu0 0.0
      %859 = vmatprep.subr.mxu0 0.0
      %860 = vmatpush2.msra.mxu0 0.0
      %861 = vmatprep.subr.mxu0 0.0
      %862 = vmatpush2.msra.mxu0 0.0
      %863 = vmatprep.subr.mxu0 0.0
      %864 = vmatpush2.msra.mxu0 0.0
      %865 = vmatprep.subr.mxu0 0.0
      %866 = vmatpush2.msra.mxu0 0.0
      %867 = vmatprep.subr.mxu0 0.0
      %868 = vmatpush2.msra.mxu0 0.0
      %869 = vmatprep.subr.mxu0 0.0
      %870 = vmatpush2.msra.mxu0 0.0
      %871 = vmatprep.subr.mxu0 0.0
      %872 = vmatpush2.msra.mxu0 0.0
      %873 = vmatprep.subr.mxu0 0.0
      %874 = vmatpush2.msra.mxu0 0.0
      %875 = vmatprep.subr.mxu0 0.0
      %876 = vmatpush2.msra.mxu0 0.0
      %877 = vmatprep.subr.mxu0 0.0
      %878 = vmatpush2.msra.mxu0 0.0
      %879 = vmatprep.mubr.f32.mxu0 0.0
      %880 = vmatmul.mubr.f32.gmra.mxu0 %v804
      %v881 = vpop.f32.mrf.mxu0
      %v882 = vadd.f32 0.0, %v881
      %v883 = vpop.f32.mrf.mxu0
      %884 = vmatprep.mubr.f32.mxu0 0.0
      %885 = vmatmul.mubr.f32.gmra.mxu0 %v807
      %v886 = vpop.f32.mrf.mxu0
      %v887 = vadd.f32 0.0, %v886
      %v888 = vpop.f32.mrf.mxu0
      %889 = vmatprep.mubr.f32.mxu0 0.0
      %890 = vmatmul.mubr.f32.gmra.mxu0 %v810
      %v891 = vpop.f32.mrf.mxu0
      %v892 = vadd.f32 0.0, %v891
      %v893 = vpop.f32.mrf.mxu0
      %894 = vmatprep.mubr.f32.mxu0 0.0
      %895 = vmatmul.mubr.f32.gmra.mxu0 %v813
      %v896 = vpop.f32.mrf.mxu0
      %v897 = vadd.f32 0.0, %v896
      %v898 = vpop.f32.mrf.mxu0
      %899 = vdwg.mxu0
      %v900 = vadd.f32 %v694, %v882
      %v901 = vadd.f32 %v695, %v887
      %v902 = vadd.f32 %v696, %v892
      %v903 = vadd.f32 %v697, %v897
      %vm904 = vcmask 64512
      %905 = vst.msk [vmem:[%s204] sm:$0xff] %vm904, %v900
      %906 = vst.msk [vmem:[%s204 + $0x8] sm:$0xff] %vm904, %v901
      %907 = vst.msk [vmem:[%s204 + $0x10] sm:$0xff] %vm904, %v902
      %908 = vst.msk [vmem:[%s204 + $0x18] sm:$0xff] %vm904, %v903
      %s909 = scalar_lea.vmem %s197, 64
      %v910 = vld [vmem:[%s909] sm:$0xff]
      %v911 = vld [vmem:[%s909 + $0x8] sm:$0xff]
      %v912 = vld [vmem:[%s909 + $0x10] sm:$0xff]
      %v913 = vld [vmem:[%s909 + $0x18] sm:$0xff]
      %v914 = vld [vmem:[%s909 + $0x20] sm:$0xff]
      %v915 = vld [vmem:[%s909 + $0x28] sm:$0xff]
      %v916 = vld [vmem:[%s909 + $0x30] sm:$0xff]
      %v917 = vld [vmem:[%s909 + $0x38] sm:$0xff]
      %v919 = vsel %vm240, %v910, 0
      %v922 = vsel %vm240, %v911, 0
      %v925 = vsel %vm240, %v912, 0
      %v928 = vsel %vm240, %v913, 0
      %v931 = vsel %vm240, %v914, 0
      %v934 = vsel %vm240, %v915, 0
      %v937 = vsel %vm240, %v916, 0
      %v940 = vsel %vm240, %v917, 0
      %942 = vmatprep.subr.mxu0 0.0
      %943 = vmatpush1.msra.mxu0 0.0
      %944 = vmatprep.subr.mxu0 0.0
      %945 = vmatpush1.msra.mxu0 0.0
      %946 = vmatprep.subr.mxu0 0.0
      %947 = vmatpush1.msra.mxu0 0.0
      %948 = vmatprep.subr.mxu0 0.0
      %949 = vmatpush1.msra.mxu0 0.0
      %950 = vmatprep.subr.mxu0 0.0
      %951 = vmatpush1.msra.mxu0 0.0
      %952 = vmatprep.subr.mxu0 0.0
      %953 = vmatpush1.msra.mxu0 0.0
      %954 = vmatprep.subr.mxu0 0.0
      %955 = vmatpush1.msra.mxu0 0.0
      %956 = vmatprep.subr.mxu0 0.0
      %957 = vmatpush1.msra.mxu0 0.0
      %958 = vmatprep.subr.mxu0 0.0
      %959 = vmatpush1.msra.mxu0 0.0
      %960 = vmatprep.subr.mxu0 0.0
      %961 = vmatpush1.msra.mxu0 0.0
      %962 = vmatprep.subr.mxu0 0.0
      %963 = vmatpush1.msra.mxu0 0.0
      %964 = vmatprep.subr.mxu0 0.0
      %965 = vmatpush1.msra.mxu0 0.0
      %966 = vmatprep.subr.mxu0 0.0
      %967 = vmatpush1.msra.mxu0 0.0
      %968 = vmatprep.subr.mxu0 0.0
      %969 = vmatpush1.msra.mxu0 0.0
      %970 = vmatprep.subr.mxu0 0.0
      %971 = vmatpush1.msra.mxu0 %v207
      %972 = vmatprep.subr.mxu0 0.0
      %973 = vmatpush1.msra.mxu0 %v206
      %974 = vmatprep.subr.mxu0 0.0
      %975 = vmatpush2.msra.mxu0 0.0
      %976 = vmatprep.subr.mxu0 0.0
      %977 = vmatpush2.msra.mxu0 0.0
      %978 = vmatprep.subr.mxu0 0.0
      %979 = vmatpush2.msra.mxu0 0.0
      %980 = vmatprep.subr.mxu0 0.0
      %981 = vmatpush2.msra.mxu0 0.0
      %982 = vmatprep.subr.mxu0 0.0
      %983 = vmatpush2.msra.mxu0 0.0
      %984 = vmatprep.subr.mxu0 0.0
      %985 = vmatpush2.msra.mxu0 0.0
      %986 = vmatprep.subr.mxu0 0.0
      %987 = vmatpush2.msra.mxu0 0.0
      %988 = vmatprep.subr.mxu0 0.0
      %989 = vmatpush2.msra.mxu0 0.0
      %990 = vmatprep.subr.mxu0 0.0
      %991 = vmatpush2.msra.mxu0 0.0
      %992 = vmatprep.subr.mxu0 0.0
      %993 = vmatpush2.msra.mxu0 0.0
      %994 = vmatprep.subr.mxu0 0.0
      %995 = vmatpush2.msra.mxu0 0.0
      %996 = vmatprep.subr.mxu0 0.0
      %997 = vmatpush2.msra.mxu0 0.0
      %998 = vmatprep.subr.mxu0 0.0
      %999 = vmatpush2.msra.mxu0 0.0
      %1000 = vmatprep.subr.mxu0 0.0
      %1001 = vmatpush2.msra.mxu0 0.0
      %1002 = vmatprep.subr.mxu0 0.0
      %1003 = vmatpush2.msra.mxu0 0.0
      %1004 = vmatprep.subr.mxu0 0.0
      %1005 = vmatpush2.msra.mxu0 0.0
      %1006 = vmatprep.mubr.f32.mxu0 0.0
      %1007 = vmatmul.mubr.f32.gmra.mxu0 %v919
      %v1008 = vpop.f32.mrf.mxu0
      %v1009 = vadd.f32 0.0, %v1008
      %v1010 = vpop.f32.mrf.mxu0
      %1011 = vmatprep.mubr.f32.mxu0 0.0
      %1012 = vmatmul.mubr.f32.gmra.mxu0 %v922
      %v1013 = vpop.f32.mrf.mxu0
      %v1014 = vadd.f32 0.0, %v1013
      %v1015 = vpop.f32.mrf.mxu0
      %1016 = vmatprep.mubr.f32.mxu0 0.0
      %1017 = vmatmul.mubr.f32.gmra.mxu0 %v925
      %v1018 = vpop.f32.mrf.mxu0
      %v1019 = vadd.f32 0.0, %v1018
      %v1020 = vpop.f32.mrf.mxu0
      %1021 = vmatprep.mubr.f32.mxu0 0.0
      %1022 = vmatmul.mubr.f32.gmra.mxu0 %v928
      %v1023 = vpop.f32.mrf.mxu0
      %v1024 = vadd.f32 0.0, %v1023
      %v1025 = vpop.f32.mrf.mxu0
      %1026 = vmatprep.mubr.f32.mxu0 0.0
      %1027 = vmatmul.mubr.f32.gmra.mxu0 %v931
      %v1028 = vpop.f32.mrf.mxu0
      %v1029 = vadd.f32 0.0, %v1028
      %v1030 = vpop.f32.mrf.mxu0
      %1031 = vmatprep.mubr.f32.mxu0 0.0
      %1032 = vmatmul.mubr.f32.gmra.mxu0 %v934
      %v1033 = vpop.f32.mrf.mxu0
      %v1034 = vadd.f32 0.0, %v1033
      %v1035 = vpop.f32.mrf.mxu0
      %1036 = vmatprep.mubr.f32.mxu0 0.0
      %1037 = vmatmul.mubr.f32.gmra.mxu0 %v937
      %v1038 = vpop.f32.mrf.mxu0
      %v1039 = vadd.f32 0.0, %v1038
      %v1040 = vpop.f32.mrf.mxu0
      %1041 = vmatprep.mubr.f32.mxu0 0.0
      %1042 = vmatmul.mubr.f32.gmra.mxu0 %v940
      %v1043 = vpop.f32.mrf.mxu0
      %v1044 = vadd.f32 0.0, %v1043
      %v1045 = vpop.f32.mrf.mxu0
      %1046 = vdwg.mxu0
      %1047 = vmatprep.subr.mxu0 0.0
      %1048 = vmatpush1.msra.mxu0 0.0
      %1049 = vmatprep.subr.mxu0 0.0
      %1050 = vmatpush1.msra.mxu0 0.0
      %1051 = vmatprep.subr.mxu0 0.0
      %1052 = vmatpush1.msra.mxu0 0.0
      %1053 = vmatprep.subr.mxu0 0.0
      %1054 = vmatpush1.msra.mxu0 0.0
      %1055 = vmatprep.subr.mxu0 0.0
      %1056 = vmatpush1.msra.mxu0 0.0
      %1057 = vmatprep.subr.mxu0 0.0
      %1058 = vmatpush1.msra.mxu0 0.0
      %1059 = vmatprep.subr.mxu0 0.0
      %1060 = vmatpush1.msra.mxu0 0.0
      %1061 = vmatprep.subr.mxu0 0.0
      %1062 = vmatpush1.msra.mxu0 0.0
      %1063 = vmatprep.subr.mxu0 0.0
      %1064 = vmatpush1.msra.mxu0 %v1044
      %1065 = vmatprep.subr.mxu0 0.0
      %1066 = vmatpush1.msra.mxu0 %v1039
      %1067 = vmatprep.subr.mxu0 0.0
      %1068 = vmatpush1.msra.mxu0 %v1034
      %1069 = vmatprep.subr.mxu0 0.0
      %1070 = vmatpush1.msra.mxu0 %v1029
      %1071 = vmatprep.subr.mxu0 0.0
      %1072 = vmatpush1.msra.mxu0 %v1024
      %1073 = vmatprep.subr.mxu0 0.0
      %1074 = vmatpush1.msra.mxu0 %v1019
      %1075 = vmatprep.subr.mxu0 0.0
      %1076 = vmatpush1.msra.mxu0 %v1014
      %1077 = vmatprep.subr.mxu0 0.0
      %1078 = vmatpush1.msra.mxu0 %v1009
      %1079 = vmatprep.subr.mxu0 0.0
      %1080 = vmatpush2.msra.mxu0 0.0
      %1081 = vmatprep.subr.mxu0 0.0
      %1082 = vmatpush2.msra.mxu0 0.0
      %1083 = vmatprep.subr.mxu0 0.0
      %1084 = vmatpush2.msra.mxu0 0.0
      %1085 = vmatprep.subr.mxu0 0.0
      %1086 = vmatpush2.msra.mxu0 0.0
      %1087 = vmatprep.subr.mxu0 0.0
      %1088 = vmatpush2.msra.mxu0 0.0
      %1089 = vmatprep.subr.mxu0 0.0
      %1090 = vmatpush2.msra.mxu0 0.0
      %1091 = vmatprep.subr.mxu0 0.0
      %1092 = vmatpush2.msra.mxu0 0.0
      %1093 = vmatprep.subr.mxu0 0.0
      %1094 = vmatpush2.msra.mxu0 0.0
      %1095 = vmatprep.subr.mxu0 0.0
      %1096 = vmatpush2.msra.mxu0 0.0
      %1097 = vmatprep.subr.mxu0 0.0
      %1098 = vmatpush2.msra.mxu0 0.0
      %1099 = vmatprep.subr.mxu0 0.0
      %1100 = vmatpush2.msra.mxu0 0.0
      %1101 = vmatprep.subr.mxu0 0.0
      %1102 = vmatpush2.msra.mxu0 0.0
      %1103 = vmatprep.subr.mxu0 0.0
      %1104 = vmatpush2.msra.mxu0 0.0
      %1105 = vmatprep.subr.mxu0 0.0
      %1106 = vmatpush2.msra.mxu0 0.0
      %1107 = vmatprep.subr.mxu0 0.0
      %1108 = vmatpush2.msra.mxu0 0.0
      %1109 = vmatprep.subr.mxu0 0.0
      %1110 = vmatpush2.msra.mxu0 0.0
      %1111 = vmatprep.mubr.f32.mxu0 0.0
      %1112 = vmatmul.mubr.f32.gmra.mxu0 %v372
      %v1113 = vpop.f32.mrf.mxu0
      %v1114 = vadd.f32 0.0, %v1113
      %v1115 = vpop.f32.mrf.mxu0
      %1116 = vmatprep.mubr.f32.mxu0 0.0
      %1117 = vmatmul.mubr.f32.gmra.mxu0 %v375
      %v1118 = vpop.f32.mrf.mxu0
      %v1119 = vadd.f32 0.0, %v1118
      %v1120 = vpop.f32.mrf.mxu0
      %1121 = vmatprep.mubr.f32.mxu0 0.0
      %1122 = vmatmul.mubr.f32.gmra.mxu0 %v378
      %v1123 = vpop.f32.mrf.mxu0
      %v1124 = vadd.f32 0.0, %v1123
      %v1125 = vpop.f32.mrf.mxu0
      %1126 = vmatprep.mubr.f32.mxu0 0.0
      %1127 = vmatmul.mubr.f32.gmra.mxu0 %v381
      %v1128 = vpop.f32.mrf.mxu0
      %v1129 = vadd.f32 0.0, %v1128
      %v1130 = vpop.f32.mrf.mxu0
      %1131 = vdwg.mxu0
      %v1132 = vadd.f32 %v471, %v1114
      %v1133 = vadd.f32 %v476, %v1119
      %v1134 = vadd.f32 %v481, %v1124
      %v1135 = vadd.f32 %v486, %v1129
      %1136 = vmatprep.subr.mxu0 0.0
      %1137 = vmatpush1.msra.mxu0 0.0
      %1138 = vmatprep.subr.mxu0 0.0
      %1139 = vmatpush1.msra.mxu0 0.0
      %1140 = vmatprep.subr.mxu0 0.0
      %1141 = vmatpush1.msra.mxu0 0.0
      %1142 = vmatprep.subr.mxu0 0.0
      %1143 = vmatpush1.msra.mxu0 0.0
      %1144 = vmatprep.subr.mxu0 0.0
      %1145 = vmatpush1.msra.mxu0 0.0
      %1146 = vmatprep.subr.mxu0 0.0
      %1147 = vmatpush1.msra.mxu0 0.0
      %1148 = vmatprep.subr.mxu0 0.0
      %1149 = vmatpush1.msra.mxu0 0.0
      %1150 = vmatprep.subr.mxu0 0.0
      %1151 = vmatpush1.msra.mxu0 0.0
      %1152 = vmatprep.subr.mxu0 0.0
      %1153 = vmatpush1.msra.mxu0 0.0
      %1154 = vmatprep.subr.mxu0 0.0
      %1155 = vmatpush1.msra.mxu0 0.0
      %1156 = vmatprep.subr.mxu0 0.0
      %1157 = vmatpush1.msra.mxu0 0.0
      %1158 = vmatprep.subr.mxu0 0.0
      %1159 = vmatpush1.msra.mxu0 0.0
      %1160 = vmatprep.subr.mxu0 0.0
      %1161 = vmatpush1.msra.mxu0 0.0
      %1162 = vmatprep.subr.mxu0 0.0
      %1163 = vmatpush1.msra.mxu0 0.0
      %1164 = vmatprep.subr.mxu0 0.0
      %1165 = vmatpush1.msra.mxu0 %v210
      %1166 = vmatprep.subr.mxu0 0.0
      %1167 = vmatpush1.msra.mxu0 %v209
      %1168 = vmatprep.subr.mxu0 0.0
      %1169 = vmatpush2.msra.mxu0 0.0
      %1170 = vmatprep.subr.mxu0 0.0
      %1171 = vmatpush2.msra.mxu0 0.0
      %1172 = vmatprep.subr.mxu0 0.0
      %1173 = vmatpush2.msra.mxu0 0.0
      %1174 = vmatprep.subr.mxu0 0.0
      %1175 = vmatpush2.msra.mxu0 0.0
      %1176 = vmatprep.subr.mxu0 0.0
      %1177 = vmatpush2.msra.mxu0 0.0
      %1178 = vmatprep.subr.mxu0 0.0
      %1179 = vmatpush2.msra.mxu0 0.0
      %1180 = vmatprep.subr.mxu0 0.0
      %1181 = vmatpush2.msra.mxu0 0.0
      %1182 = vmatprep.subr.mxu0 0.0
      %1183 = vmatpush2.msra.mxu0 0.0
      %1184 = vmatprep.subr.mxu0 0.0
      %1185 = vmatpush2.msra.mxu0 0.0
      %1186 = vmatprep.subr.mxu0 0.0
      %1187 = vmatpush2.msra.mxu0 0.0
      %1188 = vmatprep.subr.mxu0 0.0
      %1189 = vmatpush2.msra.mxu0 0.0
      %1190 = vmatprep.subr.mxu0 0.0
      %1191 = vmatpush2.msra.mxu0 0.0
      %1192 = vmatprep.subr.mxu0 0.0
      %1193 = vmatpush2.msra.mxu0 0.0
      %1194 = vmatprep.subr.mxu0 0.0
      %1195 = vmatpush2.msra.mxu0 0.0
      %1196 = vmatprep.subr.mxu0 0.0
      %1197 = vmatpush2.msra.mxu0 0.0
      %1198 = vmatprep.subr.mxu0 0.0
      %1199 = vmatpush2.msra.mxu0 0.0
      %1200 = vmatprep.mubr.f32.mxu0 0.0
      %1201 = vmatmul.mubr.f32.gmra.mxu0 %v919
      %v1202 = vpop.f32.mrf.mxu0
      %v1203 = vadd.f32 0.0, %v1202
      %v1204 = vpop.f32.mrf.mxu0
      %1205 = vmatprep.mubr.f32.mxu0 0.0
      %1206 = vmatmul.mubr.f32.gmra.mxu0 %v922
      %v1207 = vpop.f32.mrf.mxu0
      %v1208 = vadd.f32 0.0, %v1207
      %v1209 = vpop.f32.mrf.mxu0
      %1210 = vmatprep.mubr.f32.mxu0 0.0
      %1211 = vmatmul.mubr.f32.gmra.mxu0 %v925
      %v1212 = vpop.f32.mrf.mxu0
      %v1213 = vadd.f32 0.0, %v1212
      %v1214 = vpop.f32.mrf.mxu0
      %1215 = vmatprep.mubr.f32.mxu0 0.0
      %1216 = vmatmul.mubr.f32.gmra.mxu0 %v928
      %v1217 = vpop.f32.mrf.mxu0
      %v1218 = vadd.f32 0.0, %v1217
      %v1219 = vpop.f32.mrf.mxu0
      %1220 = vmatprep.mubr.f32.mxu0 0.0
      %1221 = vmatmul.mubr.f32.gmra.mxu0 %v931
      %v1222 = vpop.f32.mrf.mxu0
      %v1223 = vadd.f32 0.0, %v1222
      %v1224 = vpop.f32.mrf.mxu0
      %1225 = vmatprep.mubr.f32.mxu0 0.0
      %1226 = vmatmul.mubr.f32.gmra.mxu0 %v934
      %v1227 = vpop.f32.mrf.mxu0
      %v1228 = vadd.f32 0.0, %v1227
      %v1229 = vpop.f32.mrf.mxu0
      %1230 = vmatprep.mubr.f32.mxu0 0.0
      %1231 = vmatmul.mubr.f32.gmra.mxu0 %v937
      %v1232 = vpop.f32.mrf.mxu0
      %v1233 = vadd.f32 0.0, %v1232
      %v1234 = vpop.f32.mrf.mxu0
      %1235 = vmatprep.mubr.f32.mxu0 0.0
      %1236 = vmatmul.mubr.f32.gmra.mxu0 %v940
      %v1237 = vpop.f32.mrf.mxu0
      %v1238 = vadd.f32 0.0, %v1237
      %v1239 = vpop.f32.mrf.mxu0
      %1240 = vdwg.mxu0
      %1241 = vmatprep.subr.mxu0 0.0
      %1242 = vmatpush1.msra.mxu0 0.0
      %1243 = vmatprep.subr.mxu0 0.0
      %1244 = vmatpush1.msra.mxu0 0.0
      %1245 = vmatprep.subr.mxu0 0.0
      %1246 = vmatpush1.msra.mxu0 0.0
      %1247 = vmatprep.subr.mxu0 0.0
      %1248 = vmatpush1.msra.mxu0 0.0
      %1249 = vmatprep.subr.mxu0 0.0
      %1250 = vmatpush1.msra.mxu0 0.0
      %1251 = vmatprep.subr.mxu0 0.0
      %1252 = vmatpush1.msra.mxu0 0.0
      %1253 = vmatprep.subr.mxu0 0.0
      %1254 = vmatpush1.msra.mxu0 0.0
      %1255 = vmatprep.subr.mxu0 0.0
      %1256 = vmatpush1.msra.mxu0 0.0
      %1257 = vmatprep.subr.mxu0 0.0
      %1258 = vmatpush1.msra.mxu0 %v1238
      %1259 = vmatprep.subr.mxu0 0.0
      %1260 = vmatpush1.msra.mxu0 %v1233
      %1261 = vmatprep.subr.mxu0 0.0
      %1262 = vmatpush1.msra.mxu0 %v1228
      %1263 = vmatprep.subr.mxu0 0.0
      %1264 = vmatpush1.msra.mxu0 %v1223
      %1265 = vmatprep.subr.mxu0 0.0
      %1266 = vmatpush1.msra.mxu0 %v1218
      %1267 = vmatprep.subr.mxu0 0.0
      %1268 = vmatpush1.msra.mxu0 %v1213
      %1269 = vmatprep.subr.mxu0 0.0
      %1270 = vmatpush1.msra.mxu0 %v1208
      %1271 = vmatprep.subr.mxu0 0.0
      %1272 = vmatpush1.msra.mxu0 %v1203
      %1273 = vmatprep.subr.mxu0 0.0
      %1274 = vmatpush2.msra.mxu0 0.0
      %1275 = vmatprep.subr.mxu0 0.0
      %1276 = vmatpush2.msra.mxu0 0.0
      %1277 = vmatprep.subr.mxu0 0.0
      %1278 = vmatpush2.msra.mxu0 0.0
      %1279 = vmatprep.subr.mxu0 0.0
      %1280 = vmatpush2.msra.mxu0 0.0
      %1281 = vmatprep.subr.mxu0 0.0
      %1282 = vmatpush2.msra.mxu0 0.0
      %1283 = vmatprep.subr.mxu0 0.0
      %1284 = vmatpush2.msra.mxu0 0.0
      %1285 = vmatprep.subr.mxu0 0.0
      %1286 = vmatpush2.msra.mxu0 0.0
      %1287 = vmatprep.subr.mxu0 0.0
      %1288 = vmatpush2.msra.mxu0 0.0
      %1289 = vmatprep.subr.mxu0 0.0
      %1290 = vmatpush2.msra.mxu0 0.0
      %1291 = vmatprep.subr.mxu0 0.0
      %1292 = vmatpush2.msra.mxu0 0.0
      %1293 = vmatprep.subr.mxu0 0.0
      %1294 = vmatpush2.msra.mxu0 0.0
      %1295 = vmatprep.subr.mxu0 0.0
      %1296 = vmatpush2.msra.mxu0 0.0
      %1297 = vmatprep.subr.mxu0 0.0
      %1298 = vmatpush2.msra.mxu0 0.0
      %1299 = vmatprep.subr.mxu0 0.0
      %1300 = vmatpush2.msra.mxu0 0.0
      %1301 = vmatprep.subr.mxu0 0.0
      %1302 = vmatpush2.msra.mxu0 0.0
      %1303 = vmatprep.subr.mxu0 0.0
      %1304 = vmatpush2.msra.mxu0 0.0
      %1305 = vmatprep.mubr.f32.mxu0 0.0
      %1306 = vmatmul.mubr.f32.gmra.mxu0 %v598
      %v1307 = vpop.f32.mrf.mxu0
      %v1308 = vadd.f32 0.0, %v1307
      %v1309 = vpop.f32.mrf.mxu0
      %1310 = vmatprep.mubr.f32.mxu0 0.0
      %1311 = vmatmul.mubr.f32.gmra.mxu0 %v601
      %v1312 = vpop.f32.mrf.mxu0
      %v1313 = vadd.f32 0.0, %v1312
      %v1314 = vpop.f32.mrf.mxu0
      %1315 = vmatprep.mubr.f32.mxu0 0.0
      %1316 = vmatmul.mubr.f32.gmra.mxu0 %v604
      %v1317 = vpop.f32.mrf.mxu0
      %v1318 = vadd.f32 0.0, %v1317
      %v1319 = vpop.f32.mrf.mxu0
      %1320 = vmatprep.mubr.f32.mxu0 0.0
      %1321 = vmatmul.mubr.f32.gmra.mxu0 %v607
      %v1322 = vpop.f32.mrf.mxu0
      %v1323 = vadd.f32 0.0, %v1322
      %v1324 = vpop.f32.mrf.mxu0
      %1325 = vdwg.mxu0
      %v1326 = vadd.f32 %v1132, %v1308
      %v1327 = vadd.f32 %v1133, %v1313
      %v1328 = vadd.f32 %v1134, %v1318
      %v1329 = vadd.f32 %v1135, %v1323
      %1330 = vmatprep.subr.mxu0 0.0
      %1331 = vmatpush1.msra.mxu0 0.0
      %1332 = vmatprep.subr.mxu0 0.0
      %1333 = vmatpush1.msra.mxu0 0.0
      %1334 = vmatprep.subr.mxu0 0.0
      %1335 = vmatpush1.msra.mxu0 0.0
      %1336 = vmatprep.subr.mxu0 0.0
      %1337 = vmatpush1.msra.mxu0 0.0
      %1338 = vmatprep.subr.mxu0 0.0
      %1339 = vmatpush1.msra.mxu0 0.0
      %1340 = vmatprep.subr.mxu0 0.0
      %1341 = vmatpush1.msra.mxu0 0.0
      %1342 = vmatprep.subr.mxu0 0.0
      %1343 = vmatpush1.msra.mxu0 0.0
      %1344 = vmatprep.subr.mxu0 0.0
      %1345 = vmatpush1.msra.mxu0 0.0
      %1346 = vmatprep.subr.mxu0 0.0
      %1347 = vmatpush1.msra.mxu0 0.0
      %1348 = vmatprep.subr.mxu0 0.0
      %1349 = vmatpush1.msra.mxu0 0.0
      %1350 = vmatprep.subr.mxu0 0.0
      %1351 = vmatpush1.msra.mxu0 0.0
      %1352 = vmatprep.subr.mxu0 0.0
      %1353 = vmatpush1.msra.mxu0 0.0
      %1354 = vmatprep.subr.mxu0 0.0
      %1355 = vmatpush1.msra.mxu0 0.0
      %1356 = vmatprep.subr.mxu0 0.0
      %1357 = vmatpush1.msra.mxu0 0.0
      %1358 = vmatprep.subr.mxu0 0.0
      %1359 = vmatpush1.msra.mxu0 %v213
      %1360 = vmatprep.subr.mxu0 0.0
      %1361 = vmatpush1.msra.mxu0 %v212
      %1362 = vmatprep.subr.mxu0 0.0
      %1363 = vmatpush2.msra.mxu0 0.0
      %1364 = vmatprep.subr.mxu0 0.0
      %1365 = vmatpush2.msra.mxu0 0.0
      %1366 = vmatprep.subr.mxu0 0.0
      %1367 = vmatpush2.msra.mxu0 0.0
      %1368 = vmatprep.subr.mxu0 0.0
      %1369 = vmatpush2.msra.mxu0 0.0
      %1370 = vmatprep.subr.mxu0 0.0
      %1371 = vmatpush2.msra.mxu0 0.0
      %1372 = vmatprep.subr.mxu0 0.0
      %1373 = vmatpush2.msra.mxu0 0.0
      %1374 = vmatprep.subr.mxu0 0.0
      %1375 = vmatpush2.msra.mxu0 0.0
      %1376 = vmatprep.subr.mxu0 0.0
      %1377 = vmatpush2.msra.mxu0 0.0
      %1378 = vmatprep.subr.mxu0 0.0
      %1379 = vmatpush2.msra.mxu0 0.0
      %1380 = vmatprep.subr.mxu0 0.0
      %1381 = vmatpush2.msra.mxu0 0.0
      %1382 = vmatprep.subr.mxu0 0.0
      %1383 = vmatpush2.msra.mxu0 0.0
      %1384 = vmatprep.subr.mxu0 0.0
      %1385 = vmatpush2.msra.mxu0 0.0
      %1386 = vmatprep.subr.mxu0 0.0
      %1387 = vmatpush2.msra.mxu0 0.0
      %1388 = vmatprep.subr.mxu0 0.0
      %1389 = vmatpush2.msra.mxu0 0.0
      %1390 = vmatprep.subr.mxu0 0.0
      %1391 = vmatpush2.msra.mxu0 0.0
      %1392 = vmatprep.subr.mxu0 0.0
      %1393 = vmatpush2.msra.mxu0 0.0
      %1394 = vmatprep.mubr.f32.mxu0 0.0
      %1395 = vmatmul.mubr.f32.gmra.mxu0 %v919
      %v1396 = vpop.f32.mrf.mxu0
      %v1397 = vadd.f32 0.0, %v1396
      %v1398 = vpop.f32.mrf.mxu0
      %1399 = vmatprep.mubr.f32.mxu0 0.0
      %1400 = vmatmul.mubr.f32.gmra.mxu0 %v922
      %v1401 = vpop.f32.mrf.mxu0
      %v1402 = vadd.f32 0.0, %v1401
      %v1403 = vpop.f32.mrf.mxu0
      %1404 = vmatprep.mubr.f32.mxu0 0.0
      %1405 = vmatmul.mubr.f32.gmra.mxu0 %v925
      %v1406 = vpop.f32.mrf.mxu0
      %v1407 = vadd.f32 0.0, %v1406
      %v1408 = vpop.f32.mrf.mxu0
      %1409 = vmatprep.mubr.f32.mxu0 0.0
      %1410 = vmatmul.mubr.f32.gmra.mxu0 %v928
      %v1411 = vpop.f32.mrf.mxu0
      %v1412 = vadd.f32 0.0, %v1411
      %v1413 = vpop.f32.mrf.mxu0
      %1414 = vmatprep.mubr.f32.mxu0 0.0
      %1415 = vmatmul.mubr.f32.gmra.mxu0 %v931
      %v1416 = vpop.f32.mrf.mxu0
      %v1417 = vadd.f32 0.0, %v1416
      %v1418 = vpop.f32.mrf.mxu0
      %1419 = vmatprep.mubr.f32.mxu0 0.0
      %1420 = vmatmul.mubr.f32.gmra.mxu0 %v934
      %v1421 = vpop.f32.mrf.mxu0
      %v1422 = vadd.f32 0.0, %v1421
      %v1423 = vpop.f32.mrf.mxu0
      %1424 = vmatprep.mubr.f32.mxu0 0.0
      %1425 = vmatmul.mubr.f32.gmra.mxu0 %v937
      %v1426 = vpop.f32.mrf.mxu0
      %v1427 = vadd.f32 0.0, %v1426
      %v1428 = vpop.f32.mrf.mxu0
      %1429 = vmatprep.mubr.f32.mxu0 0.0
      %1430 = vmatmul.mubr.f32.gmra.mxu0 %v940
      %v1431 = vpop.f32.mrf.mxu0
      %v1432 = vadd.f32 0.0, %v1431
      %v1433 = vpop.f32.mrf.mxu0
      %1434 = vdwg.mxu0
      %1435 = vmatprep.subr.mxu0 0.0
      %1436 = vmatpush1.msra.mxu0 0.0
      %1437 = vmatprep.subr.mxu0 0.0
      %1438 = vmatpush1.msra.mxu0 0.0
      %1439 = vmatprep.subr.mxu0 0.0
      %1440 = vmatpush1.msra.mxu0 0.0
      %1441 = vmatprep.subr.mxu0 0.0
      %1442 = vmatpush1.msra.mxu0 0.0
      %1443 = vmatprep.subr.mxu0 0.0
      %1444 = vmatpush1.msra.mxu0 0.0
      %1445 = vmatprep.subr.mxu0 0.0
      %1446 = vmatpush1.msra.mxu0 0.0
      %1447 = vmatprep.subr.mxu0 0.0
      %1448 = vmatpush1.msra.mxu0 0.0
      %1449 = vmatprep.subr.mxu0 0.0
      %1450 = vmatpush1.msra.mxu0 0.0
      %1451 = vmatprep.subr.mxu0 0.0
      %1452 = vmatpush1.msra.mxu0 %v1432
      %1453 = vmatprep.subr.mxu0 0.0
      %1454 = vmatpush1.msra.mxu0 %v1427
      %1455 = vmatprep.subr.mxu0 0.0
      %1456 = vmatpush1.msra.mxu0 %v1422
      %1457 = vmatprep.subr.mxu0 0.0
      %1458 = vmatpush1.msra.mxu0 %v1417
      %1459 = vmatprep.subr.mxu0 0.0
      %1460 = vmatpush1.msra.mxu0 %v1412
      %1461 = vmatprep.subr.mxu0 0.0
      %1462 = vmatpush1.msra.mxu0 %v1407
      %1463 = vmatprep.subr.mxu0 0.0
      %1464 = vmatpush1.msra.mxu0 %v1402
      %1465 = vmatprep.subr.mxu0 0.0
      %1466 = vmatpush1.msra.mxu0 %v1397
      %1467 = vmatprep.subr.mxu0 0.0
      %1468 = vmatpush2.msra.mxu0 0.0
      %1469 = vmatprep.subr.mxu0 0.0
      %1470 = vmatpush2.msra.mxu0 0.0
      %1471 = vmatprep.subr.mxu0 0.0
      %1472 = vmatpush2.msra.mxu0 0.0
      %1473 = vmatprep.subr.mxu0 0.0
      %1474 = vmatpush2.msra.mxu0 0.0
      %1475 = vmatprep.subr.mxu0 0.0
      %1476 = vmatpush2.msra.mxu0 0.0
      %1477 = vmatprep.subr.mxu0 0.0
      %1478 = vmatpush2.msra.mxu0 0.0
      %1479 = vmatprep.subr.mxu0 0.0
      %1480 = vmatpush2.msra.mxu0 0.0
      %1481 = vmatprep.subr.mxu0 0.0
      %1482 = vmatpush2.msra.mxu0 0.0
      %1483 = vmatprep.subr.mxu0 0.0
      %1484 = vmatpush2.msra.mxu0 0.0
      %1485 = vmatprep.subr.mxu0 0.0
      %1486 = vmatpush2.msra.mxu0 0.0
      %1487 = vmatprep.subr.mxu0 0.0
      %1488 = vmatpush2.msra.mxu0 0.0
      %1489 = vmatprep.subr.mxu0 0.0
      %1490 = vmatpush2.msra.mxu0 0.0
      %1491 = vmatprep.subr.mxu0 0.0
      %1492 = vmatpush2.msra.mxu0 0.0
      %1493 = vmatprep.subr.mxu0 0.0
      %1494 = vmatpush2.msra.mxu0 0.0
      %1495 = vmatprep.subr.mxu0 0.0
      %1496 = vmatpush2.msra.mxu0 0.0
      %1497 = vmatprep.subr.mxu0 0.0
      %1498 = vmatpush2.msra.mxu0 0.0
      %1499 = vmatprep.mubr.f32.mxu0 0.0
      %1500 = vmatmul.mubr.f32.gmra.mxu0 %v804
      %v1501 = vpop.f32.mrf.mxu0
      %v1502 = vadd.f32 0.0, %v1501
      %v1503 = vpop.f32.mrf.mxu0
      %1504 = vmatprep.mubr.f32.mxu0 0.0
      %1505 = vmatmul.mubr.f32.gmra.mxu0 %v807
      %v1506 = vpop.f32.mrf.mxu0
      %v1507 = vadd.f32 0.0, %v1506
      %v1508 = vpop.f32.mrf.mxu0
      %1509 = vmatprep.mubr.f32.mxu0 0.0
      %1510 = vmatmul.mubr.f32.gmra.mxu0 %v810
      %v1511 = vpop.f32.mrf.mxu0
      %v1512 = vadd.f32 0.0, %v1511
      %v1513 = vpop.f32.mrf.mxu0
      %1514 = vmatprep.mubr.f32.mxu0 0.0
      %1515 = vmatmul.mubr.f32.gmra.mxu0 %v813
      %v1516 = vpop.f32.mrf.mxu0
      %v1517 = vadd.f32 0.0, %v1516
      %v1518 = vpop.f32.mrf.mxu0
      %1519 = vdwg.mxu0
      %v1520 = vadd.f32 %v1326, %v1502
      %v1521 = vadd.f32 %v1327, %v1507
      %v1522 = vadd.f32 %v1328, %v1512
      %v1523 = vadd.f32 %v1329, %v1517
      %s1524 = scalar_lea.vmem %s204, 32
      %1525 = vst.msk [vmem:[%s1524] sm:$0xff] %vm904, %v1520
      %1526 = vst.msk [vmem:[%s1524 + $0x8] sm:$0xff] %vm904, %v1521
      %1527 = vst.msk [vmem:[%s1524 + $0x10] sm:$0xff] %vm904, %v1522
      %1528 = vst.msk [vmem:[%s1524 + $0x18] sm:$0xff] %vm904, %v1523
      %s1529 = smul.u32 2, %s15
      %p1530 = scmp.lt.s32.totalorder %s1529, 3
      %s1531 = scalar_select %p1530, %s1529, 3
      %s1532 = smul.addr %s1531, 4
      %s1533 = smul.addr %s1532, 8
      %s1534 = scalar_lea.vmem %s4, %s1533
      // Predicated region
      $region37: #{tpu_custom_call.1} parent=35 // pred_check
        %p1535 = pneg %p122
      $region38: #{tpu_custom_call.1} parent=35 // pred_check_branch
        %1537 = sbr.rel (%p1535) target = $region40
      $region39: #{tpu_custom_call.1} parent=35 // pred_region
        %s1538 = smul.u32 2, %s15
      $region40: #{tpu_custom_call.1} parent=35 // pred_fallthru
        _
    $region36: #{tpu_custom_call.1} parent=5 // pred_fallthru
      _
    %p1539 = scmp.le.s32.totalorder 2, %s10
    // Predicated region
    $region41: #{tpu_custom_call.1} parent=5 // pred_check
      %p1540 = pneg %p1539
    $region42: #{tpu_custom_call.1} parent=5 // pred_check_branch
      %1542 = sbr.rel (%p1540) target = $region44
    $region43: #{tpu_custom_call.1} parent=5 // pred_region
      %s1543 = ssub.s32 %s10, 2
      // Predicated region
      $region45: #{tpu_custom_call.1} parent=43 // pred_check
        %p1544 = pneg %p128
      $region46: #{tpu_custom_call.1} parent=43 // pred_check_branch
        %1546 = sbr.rel (%p1544) target = $region48
      $region47: #{tpu_custom_call.1} parent=43 // pred_region
        %s1547 = smul.u32 2, %s16
        %p1548 = scmp.lt.s32.totalorder %s1547, 3
        %s1549 = scalar_select %p1548, %s1547, 3
        %s1550 = smul.addr %s1549, 4
        %s1551 = smul.addr %s1550, 8
        %s1552 = scalar_lea.vmem %s4, %s1551
      $region48: #{tpu_custom_call.1} parent=43 // pred_fallthru
        _
    $region44: #{tpu_custom_call.1} parent=5 // pred_fallthru
      _
  $region6: #{tpu_custom_call.1} parent=0 // loop_footer
    %s14 = sadd.s32 1, %s10
  $region7: #{tpu_custom_call.1} parent=0 // loop_footer_branch
    %9 = sbr.rel target = $region3
  $region8: #{tpu_custom_call.1} parent=0 // loop_exit
    _

</llo_original>
